<compile_context>
chip_gen: v7x
topology: tpu7x:2x2x1
jax: 0.10.0
libtpu: 0.0.40
codegen_flags: <defaults>
</compile_context>

<pallas_src>
import functools

import jax
import jax.numpy as jnp
from jax.experimental import pallas as pl
from jax.experimental.pallas import tpu as pltpu


# --------------------------------------------------------------------------
# In-kernel helpers (all elementwise math in f32)
# --------------------------------------------------------------------------
def _ln(x, g, b, eps):
    mean = jnp.mean(x, axis=-1, keepdims=True)
    var = jnp.mean(jnp.square(x - mean), axis=-1, keepdims=True)
    return (x - mean) * jax.lax.rsqrt(var + eps) * g + b


def _gelu(x):
    # Exact (erf) GELU, as in HF BERT.
    return 0.5 * x * (1.0 + jax.lax.erf(x * 0.7071067811865476))


# --------------------------------------------------------------------------
# Fused kernel: grid = (B, L).  One grid step == one transformer layer for one
# batch tile; the classification head runs fused on the last layer step.
# --------------------------------------------------------------------------
def _bert_kernel(x_ref, mask_ref,
                 wqkv_ref, bqkv_ref, wo_ref, bo_ref, g1_ref, b1_ref,
                 w1_ref, bf1_ref, w2_ref, bf2_ref, g2_ref, b2_ref,
                 pw_ref, pb_ref, hg_ref, hb_ref, cw_ref, cb_ref,
                 logits_ref, state_ref, ctx_ref,
                 *, S, NH, D, eps_enc, eps_head):
    l = pl.program_id(1)
    H = NH * D

    # Seed the VMEM-resident hidden state from the (already LayerNormed)
    # embeddings on the first layer of this batch tile.
    @pl.when(l == 0)
    def _():
        state_ref[...] = x_ref[...]

    x = state_ref[...]                                     # (S, H) f32, resident

    # ---- fused QKV projection: one (H, 3H) MXU matmul ----
    qkv = jnp.dot(x.astype(jnp.bfloat16), wqkv_ref[...],
                  preferred_element_type=jnp.float32) + bqkv_ref[...]   # (S, 3H)
    qkv_bf = qkv.astype(jnp.bfloat16)                      # cast once, sliced per head

    # ---- multi-head self-attention: transpose-free dot_general per head,
    #      context written straight into VMEM scratch (no concatenates) ----
    scale = 1.0 / (D ** 0.5)
    mask = mask_ref[...]                                   # (1, S) additive mask
    for h in range(NH):
        q = qkv_bf[:, h * D:(h + 1) * D]                   # (S, D)
        k = qkv_bf[:, H + h * D:H + (h + 1) * D]           # (S, D)
        v = qkv_bf[:, 2 * H + h * D:2 * H + (h + 1) * D]   # (S, D)
        # contract over D on both operands -> q @ k^T without an XLU transpose
        s = jax.lax.dot_general(q, k, (((1,), (1,)), ((), ())),
                                preferred_element_type=jnp.float32)     # (S, S)
        s = s * scale + mask
        s = s - jnp.max(s, axis=-1, keepdims=True)
        p = jnp.exp(s)
        p = p * pl.reciprocal(jnp.sum(p, axis=-1, keepdims=True), approx=True)
        ctx_ref[:, h * D:(h + 1) * D] = jnp.dot(
            p.astype(jnp.bfloat16), v, preferred_element_type=jnp.float32)

    # ---- output projection + residual + LayerNorm (dropout = identity) ----
    attn = jnp.dot(ctx_ref[...].astype(jnp.bfloat16), wo_ref[...],
                   preferred_element_type=jnp.float32) + bo_ref[...]
    x1 = _ln(x + attn, g1_ref[...], b1_ref[...], eps_enc)

    # ---- FFN (GELU, f32) + residual + LayerNorm ----
    mid = _gelu(jnp.dot(x1.astype(jnp.bfloat16), w1_ref[...],
                        preferred_element_type=jnp.float32) + bf1_ref[...])
    ff = jnp.dot(mid.astype(jnp.bfloat16), w2_ref[...],
                 preferred_element_type=jnp.float32) + bf2_ref[...]
    x2 = _ln(x1 + ff, g2_ref[...], b2_ref[...], eps_enc)
    state_ref[...] = x2

    # ---- fused classification head on the last layer step ----
    @pl.when(l == pl.num_programs(1) - 1)
    def _():
        cls = x2[0:1, :]                                              # CLS row (1, H)
        pooled = jnp.tanh(jnp.dot(cls.astype(jnp.bfloat16), pw_ref[...],
                                  preferred_element_type=jnp.float32) + pb_ref[...])
        # dropout = identity (eval); nn.LayerNorm default eps = 1e-5
        y = _ln(pooled, hg_ref[...], hb_ref[...], eps_head)
        logit = jnp.dot(y.astype(jnp.bfloat16), cw_ref[...],
                        preferred_element_type=jnp.float32) + cb_ref[...]   # (1, 128)
        # broadcast to all 8 sublanes -> full unmasked (8, 128) tile store
        logits_ref[...] = jnp.broadcast_to(logit, logits_ref.shape)


def bert_classifier(x_emb, add_mask, params, cfg, B, S):
    H, I, L = cfg["hidden"], cfg["intermediate"], cfg["num_layers"]
    NH = cfg["num_heads"]
    D = H // NH
    NPAD = 128

    def per_batch(*shape):
        return pl.BlockSpec((pl.Squeezed(),) + shape,
                            lambda b, l: (b,) + (0,) * len(shape))

    def per_layer(*shape):
        return pl.BlockSpec((pl.Squeezed(),) + shape,
                            lambda b, l: (l,) + (0,) * len(shape))

    def const(*shape):
        return pl.BlockSpec(shape, lambda b, l: (0,) * len(shape))

    kern = functools.partial(_bert_kernel, S=S, NH=NH, D=D,
                             eps_enc=1e-12, eps_head=1e-5)
    return pl.pallas_call(
        kern,
        out_shape=jax.ShapeDtypeStruct((B, 8, NPAD), jnp.float32),
        grid=(B, L),
        in_specs=[
            per_batch(S, H),           # embeddings after emb-LayerNorm
            per_batch(1, S),           # additive attention mask
            per_layer(H, 3 * H),       # wqkv (bf16)
            per_layer(1, 3 * H),       # bqkv
            per_layer(H, H),           # wo (bf16)
            per_layer(1, H),           # bo
            per_layer(1, H),           # ln1 gamma
            per_layer(1, H),           # ln1 beta
            per_layer(H, I),           # w1 (bf16)
            per_layer(1, I),           # b1
            per_layer(I, H),           # w2 (bf16)
            per_layer(1, H),           # b2
            per_layer(1, H),           # ln2 gamma
            per_layer(1, H),           # ln2 beta
            const(H, H),               # pooler_w (bf16)
            const(1, H),               # pooler_b
            const(1, H),               # head LN gamma
            const(1, H),               # head LN beta
            const(H, NPAD),            # classifier weight, lane-padded (bf16)
            const(1, NPAD),            # classifier bias, lane-padded
        ],
        out_specs=pl.BlockSpec((pl.Squeezed(), 8, NPAD), lambda b, l: (b, 0, 0)),
        scratch_shapes=[
            pltpu.VMEM((S, H), jnp.float32),   # resident hidden state per batch tile
            pltpu.VMEM((S, H), jnp.float32),   # attention context
        ],
        compiler_params=pltpu.CompilerParams(
            dimension_semantics=("parallel", "arbitrary"),
            vmem_limit_bytes=48 * 1024 * 1024),
    )(x_emb, add_mask,
      params["wqkv"], params["bqkv"], params["wo"], params["bo"],
      params["ln1_g"], params["ln1_b"], params["w1"], params["b1"],
      params["w2"], params["b2"], params["ln2_g"], params["ln2_b"],
      params["pooler_w"], params["pooler_b"],
      params["head_ln_g"], params["head_ln_b"],
      params["cls_w_pad"], params["cls_b_pad"])


# --------------------------------------------------------------------------
# Model (small synthetic BERT config + classification head)
# --------------------------------------------------------------------------
CFG = dict(
    vocab_size=64,
    max_position=16,
    type_vocab=2,
    hidden=32,
    num_heads=4,
    num_layers=2,
    intermediate=64,
    num_labels=3,
)


def init_params(key, cfg):
    H, I, L = cfg["hidden"], cfg["intermediate"], cfg["num_layers"]
    NL = cfg["num_labels"]
    keys = iter(jax.random.split(key, 64))
    nk = lambda: next(keys)

    def w_bf16(*shape):   # MXU weights stored in bf16 (halves HBM/DMA bytes)
        return (0.02 * jax.random.normal(nk(), shape, jnp.float32)).astype(jnp.bfloat16)

    zeros = lambda *shape: jnp.zeros(shape, jnp.float32)
    ones = lambda *shape: jnp.ones(shape, jnp.float32)

    params = dict(
        word_emb=0.02 * jax.random.normal(nk(), (cfg["vocab_size"], H), jnp.float32),
        pos_emb=0.02 * jax.random.normal(nk(), (cfg["max_position"], H), jnp.float32),
        type_emb=0.02 * jax.random.normal(nk(), (cfg["type_vocab"], H), jnp.float32),
        emb_ln_g=ones(1, H), emb_ln_b=zeros(1, H),
        # encoder layer weights, stacked along a leading layer axis
        wqkv=w_bf16(L, H, 3 * H), bqkv=zeros(L, 1, 3 * H),
        wo=w_bf16(L, H, H), bo=zeros(L, 1, H),
        ln1_g=ones(L, 1, H), ln1_b=zeros(L, 1, H),
        w1=w_bf16(L, H, I), b1=zeros(L, 1, I),
        w2=w_bf16(L, I, H), b2=zeros(L, 1, H),
        ln2_g=ones(L, 1, H), ln2_b=zeros(L, 1, H),
        # pooler + classification head
        pooler_w=w_bf16(H, H), pooler_b=zeros(1, H),
        head_ln_g=ones(1, H), head_ln_b=zeros(1, H),
    )
    # classifier padded to 128 output lanes (only first NL columns are real)
    cw = 0.02 * jax.random.normal(nk(), (H, NL), jnp.float32)
    params["cls_w_pad"] = (jnp.zeros((H, 128), jnp.float32)
                           .at[:, :NL].set(cw).astype(jnp.bfloat16))
    params["cls_b_pad"] = jnp.zeros((1, 128), jnp.float32)
    return params


def forward(params, input_ids, attention_mask, token_type_ids, cfg):
    B, S = input_ids.shape
    H = cfg["hidden"]

    # Embedding lookups + embedding LayerNorm are tiny glue-level JAX ops
    # (keeps the kernel's layer-0 cold path to a plain copy).
    we = jnp.take(params["word_emb"], input_ids, axis=0)            # (B,S,H)
    pe = params["pos_emb"][:S][None]                                # (1,S,H)
    te = jnp.take(params["type_emb"], token_type_ids, axis=0)       # (B,S,H)
    emb = (we + pe + te).astype(jnp.float32)
    mean = jnp.mean(emb, axis=-1, keepdims=True)
    var = jnp.mean(jnp.square(emb - mean), axis=-1, keepdims=True)
    x_emb = ((emb - mean) * jax.lax.rsqrt(var + 1e-12)
             * params["emb_ln_g"] + params["emb_ln_b"])             # (B,S,H)

    add_mask = ((1.0 - attention_mask.astype(jnp.float32)) * -1e9).reshape(B, 1, S)

    # Single fused pallas_call: encoder layers + pooler + head LN + classifier.
    logits_pad = bert_classifier(x_emb, add_mask, params, cfg, B, S)   # (B, 8, 128)
    return logits_pad[:, 0, :cfg["num_labels"]]


# --------------------------------------------------------------------------
if __name__ == "__main__":
    B, S = 2, 8
    key = jax.random.PRNGKey(0)
    k_param, k_ids = jax.random.split(key, 2)

    params = init_params(k_param, CFG)
    input_ids = jax.random.randint(k_ids, (B, S), 0, CFG["vocab_size"], dtype=jnp.int32)
    attention_mask = jnp.ones((B, S), jnp.int32).at[1, 6:].set(0)   # mask tail of batch 1
    token_type_ids = jnp.zeros((B, S), jnp.int32)

    fwd = jax.jit(functools.partial(forward, cfg=CFG))
    logits = jax.block_until_ready(fwd(params, input_ids, attention_mask, token_type_ids))
    assert logits.shape == (B, CFG["num_labels"])
    assert bool(jnp.all(jnp.isfinite(logits)))
    print("KERNEL_OK")
</pallas_src>

<mosaic_0001>
module attributes {stable_mosaic.version = 11 : i64} {
  func.func @_bert_kernel(%arg0: i32, %arg1: i32, %arg2: memref<1x8x32xf32, #tpu.memory_space<vmem>>, %arg3: memref<1x1x8xf32, #tpu.memory_space<vmem>>, %arg4: memref<1x32x96xbf16, #tpu.memory_space<vmem>>, %arg5: memref<1x1x96xf32, #tpu.memory_space<vmem>>, %arg6: memref<1x32x32xbf16, #tpu.memory_space<vmem>>, %arg7: memref<1x1x32xf32, #tpu.memory_space<vmem>>, %arg8: memref<1x1x32xf32, #tpu.memory_space<vmem>>, %arg9: memref<1x1x32xf32, #tpu.memory_space<vmem>>, %arg10: memref<1x32x64xbf16, #tpu.memory_space<vmem>>, %arg11: memref<1x1x64xf32, #tpu.memory_space<vmem>>, %arg12: memref<1x64x32xbf16, #tpu.memory_space<vmem>>, %arg13: memref<1x1x32xf32, #tpu.memory_space<vmem>>, %arg14: memref<1x1x32xf32, #tpu.memory_space<vmem>>, %arg15: memref<1x1x32xf32, #tpu.memory_space<vmem>>, %arg16: memref<32x32xbf16, #tpu.memory_space<vmem>>, %arg17: memref<1x32xf32, #tpu.memory_space<vmem>>, %arg18: memref<1x32xf32, #tpu.memory_space<vmem>>, %arg19: memref<1x32xf32, #tpu.memory_space<vmem>>, %arg20: memref<32x128xbf16, #tpu.memory_space<vmem>>, %arg21: memref<1x128xf32, #tpu.memory_space<vmem>>, %arg22: memref<1x8x128xf32, #tpu.memory_space<vmem>>, %arg23: memref<8x32xf32, #tpu.memory_space<vmem>>, %arg24: memref<8x32xf32, #tpu.memory_space<vmem>>) attributes {dimension_semantics = [#tpu.dimension_semantics<parallel>, #tpu.dimension_semantics<arbitrary>], iteration_bounds = array<i64: 2, 2>, scalar_prefetch = 0 : i64, scratch_operands = 2 : i64, tpu.core_type = #tpu.core_type<tc>, window_params = [{transform_indices = @transform_0, window_bounds = array<i64: 1, 8, 32>}, {transform_indices = @transform_1, window_bounds = array<i64: 1, 1, 8>}, {transform_indices = @transform_2, window_bounds = array<i64: 1, 32, 96>}, {transform_indices = @transform_3, window_bounds = array<i64: 1, 1, 96>}, {transform_indices = @transform_4, window_bounds = array<i64: 1, 32, 32>}, {transform_indices = @transform_5, window_bounds = array<i64: 1, 1, 32>}, {transform_indices = @transform_6, window_bounds = array<i64: 1, 1, 32>}, {transform_indices = @transform_7, window_bounds = array<i64: 1, 1, 32>}, {transform_indices = @transform_8, window_bounds = array<i64: 1, 32, 64>}, {transform_indices = @transform_9, window_bounds = array<i64: 1, 1, 64>}, {transform_indices = @transform_10, window_bounds = array<i64: 1, 64, 32>}, {transform_indices = @transform_11, window_bounds = array<i64: 1, 1, 32>}, {transform_indices = @transform_12, window_bounds = array<i64: 1, 1, 32>}, {transform_indices = @transform_13, window_bounds = array<i64: 1, 1, 32>}, {pipeline_mode = #tpu.pipeline_mode<synchronous>, transform_indices = @transform_14, window_bounds = array<i64: 32, 32>}, {pipeline_mode = #tpu.pipeline_mode<synchronous>, transform_indices = @transform_15, window_bounds = array<i64: 1, 32>}, {pipeline_mode = #tpu.pipeline_mode<synchronous>, transform_indices = @transform_16, window_bounds = array<i64: 1, 32>}, {pipeline_mode = #tpu.pipeline_mode<synchronous>, transform_indices = @transform_17, window_bounds = array<i64: 1, 32>}, {pipeline_mode = #tpu.pipeline_mode<synchronous>, transform_indices = @transform_18, window_bounds = array<i64: 32, 128>}, {pipeline_mode = #tpu.pipeline_mode<synchronous>, transform_indices = @transform_19, window_bounds = array<i64: 1, 128>}, {transform_indices = @transform_20, window_bounds = array<i64: 1, 8, 128>}]} {
    %c0_i32 = arith.constant 0 : i32
    %0 = arith.cmpi eq, %arg1, %c0_i32 : i32
    %1 = arith.extui %0 : i1 to i32
    %c0_i32_0 = arith.constant 0 : i32
    %2 = arith.cmpi ne, %1, %c0_i32_0 : i32
    scf.if %2 {
      %c0_87 = arith.constant 0 : index
      %c0_88 = arith.constant 0 : index
      %c0_89 = arith.constant 0 : index
      %190 = vector.load %arg2[%c0_87, %c0_88, %c0_89] : memref<1x8x32xf32, #tpu.memory_space<vmem>>, vector<1x8x32xf32>
      %191 = vector.shape_cast %190 : vector<1x8x32xf32> to vector<8x32xf32>
      %c0_90 = arith.constant 0 : index
      %c0_91 = arith.constant 0 : index
      %192 = vector.load %arg23[%c0_90, %c0_91] : memref<8x32xf32, #tpu.memory_space<vmem>>, vector<8x32xf32>
      tpu.vector_store %arg23[%c0_90, %c0_91], %191 {strides = array<i32>} : memref<8x32xf32, #tpu.memory_space<vmem>>, vector<8x32xf32>,
    } else {
    }
    %c0 = arith.constant 0 : index
    %c0_1 = arith.constant 0 : index
    %3 = vector.load %arg23[%c0, %c0_1] : memref<8x32xf32, #tpu.memory_space<vmem>>, vector<8x32xf32>
    %4 = arith.truncf %3 : vector<8x32xf32> to vector<8x32xbf16>
    %c0_2 = arith.constant 0 : index
    %c0_3 = arith.constant 0 : index
    %c0_4 = arith.constant 0 : index
    %5 = vector.load %arg4[%c0_2, %c0_3, %c0_4] : memref<1x32x96xbf16, #tpu.memory_space<vmem>>, vector<1x32x96xbf16>
    %6 = vector.shape_cast %5 : vector<1x32x96xbf16> to vector<32x96xbf16>
    %cst = arith.constant dense<0.000000e+00> : vector<8x96xf32>
    %7 = tpu.matmul %4, %6, %cst {dimension_numbers = #tpu.dot_dimension_numbers<[1], [0], [0], [1], [0, 0, 1, 1], [], []>} : vector<8x32xbf16>, vector<32x96xbf16>, vector<8x96xf32> -> vector<8x96xf32>
    %c0_5 = arith.constant 0 : index
    %c0_6 = arith.constant 0 : index
    %c0_7 = arith.constant 0 : index
    %8 = vector.load %arg5[%c0_5, %c0_6, %c0_7] : memref<1x1x96xf32, #tpu.memory_space<vmem>>, vector<1x1x96xf32>
    %9 = vector.shape_cast %8 : vector<1x1x96xf32> to vector<1x96xf32>
    %10 = vector.broadcast %9 : vector<1x96xf32> to vector<8x96xf32>
    %11 = arith.addf %7, %10 : vector<8x96xf32>
    %12 = arith.truncf %11 : vector<8x96xf32> to vector<8x96xbf16>
    %c0_8 = arith.constant 0 : index
    %c0_9 = arith.constant 0 : index
    %c0_10 = arith.constant 0 : index
    %13 = vector.load %arg3[%c0_8, %c0_9, %c0_10] : memref<1x1x8xf32, #tpu.memory_space<vmem>>, vector<1x1x8xf32>
    %14 = vector.shape_cast %13 : vector<1x1x8xf32> to vector<1x8xf32>
    %15 = vector.extract_strided_slice %12 {offsets = [0, 0], sizes = [8, 8], strides = [1, 1]} : vector<8x96xbf16> to vector<8x8xbf16>
    %16 = vector.extract_strided_slice %12 {offsets = [0, 32], sizes = [8, 8], strides = [1, 1]} : vector<8x96xbf16> to vector<8x8xbf16>
    %17 = vector.extract_strided_slice %12 {offsets = [0, 64], sizes = [8, 8], strides = [1, 1]} : vector<8x96xbf16> to vector<8x8xbf16>
    %cst_11 = arith.constant dense<0.000000e+00> : vector<8x8xf32>
    %18 = tpu.matmul %15, %16, %cst_11 {dimension_numbers = #tpu.dot_dimension_numbers<[1], [1], [0], [0], [0, 0, 1, 0], [], []>} : vector<8x8xbf16>, vector<8x8xbf16>, vector<8x8xf32> -> vector<8x8xf32>
    %cst_12 = arith.constant 0.353553385 : f32
    %19 = vector.broadcast %cst_12 : f32 to vector<8x8xf32>
    %20 = arith.mulf %18, %19 : vector<8x8xf32>
    %21 = vector.broadcast %14 : vector<1x8xf32> to vector<8x8xf32>
    %22 = arith.addf %20, %21 : vector<8x8xf32>
    %cst_13 = arith.constant dense<0xFF800000> : vector<8xf32>
    %23 = vector.multi_reduction <maximumf>, %22, %cst_13 [1] : vector<8x8xf32> to vector<8xf32>
    %24 = vector.shape_cast %23 : vector<8xf32> to vector<8x1xf32>
    %25 = vector.broadcast %24 : vector<8x1xf32> to vector<8x8xf32>
    %26 = arith.subf %22, %25 : vector<8x8xf32>
    %27 = math.exp %26 : vector<8x8xf32>
    %cst_14 = arith.constant dense<0.000000e+00> : vector<8xf32>
    %28 = vector.multi_reduction <add>, %27, %cst_14 [1] : vector<8x8xf32> to vector<8xf32>
    %29 = vector.shape_cast %28 : vector<8xf32> to vector<8x1xf32>
    %30 = tpu.reciprocal %29 {approx = true} : vector<8x1xf32> -> vector<8x1xf32>
    %31 = vector.broadcast %30 : vector<8x1xf32> to vector<8x8xf32>
    %32 = arith.mulf %27, %31 : vector<8x8xf32>
    %33 = arith.truncf %32 : vector<8x8xf32> to vector<8x8xbf16>
    %cst_15 = arith.constant dense<0.000000e+00> : vector<8x8xf32>
    %34 = tpu.matmul %33, %17, %cst_15 {dimension_numbers = #tpu.dot_dimension_numbers<[1], [0], [0], [1], [0, 0, 1, 1], [], []>} : vector<8x8xbf16>, vector<8x8xbf16>, vector<8x8xf32> -> vector<8x8xf32>
    %c0_16 = arith.constant 0 : index
    %c0_17 = arith.constant 0 : index
    %35 = vector.load %arg24[%c0_16, %c0_17] : memref<8x32xf32, #tpu.memory_space<vmem>>, vector<8x8xf32>
    tpu.vector_store %arg24[%c0_16, %c0_17], %34 {strides = array<i32>} : memref<8x32xf32, #tpu.memory_space<vmem>>, vector<8x8xf32>,
    %36 = vector.extract_strided_slice %12 {offsets = [0, 8], sizes = [8, 8], strides = [1, 1]} : vector<8x96xbf16> to vector<8x8xbf16>
    %37 = vector.extract_strided_slice %12 {offsets = [0, 40], sizes = [8, 8], strides = [1, 1]} : vector<8x96xbf16> to vector<8x8xbf16>
    %38 = vector.extract_strided_slice %12 {offsets = [0, 72], sizes = [8, 8], strides = [1, 1]} : vector<8x96xbf16> to vector<8x8xbf16>
    %cst_18 = arith.constant dense<0.000000e+00> : vector<8x8xf32>
    %39 = tpu.matmul %36, %37, %cst_18 {dimension_numbers = #tpu.dot_dimension_numbers<[1], [1], [0], [0], [0, 0, 1, 0], [], []>} : vector<8x8xbf16>, vector<8x8xbf16>, vector<8x8xf32> -> vector<8x8xf32>
    %cst_19 = arith.constant 0.353553385 : f32
    %40 = vector.broadcast %cst_19 : f32 to vector<8x8xf32>
    %41 = arith.mulf %39, %40 : vector<8x8xf32>
    %42 = vector.broadcast %14 : vector<1x8xf32> to vector<8x8xf32>
    %43 = arith.addf %41, %42 : vector<8x8xf32>
    %cst_20 = arith.constant dense<0xFF800000> : vector<8xf32>
    %44 = vector.multi_reduction <maximumf>, %43, %cst_20 [1] : vector<8x8xf32> to vector<8xf32>
    %45 = vector.shape_cast %44 : vector<8xf32> to vector<8x1xf32>
    %46 = vector.broadcast %45 : vector<8x1xf32> to vector<8x8xf32>
    %47 = arith.subf %43, %46 : vector<8x8xf32>
    %48 = math.exp %47 : vector<8x8xf32>
    %cst_21 = arith.constant dense<0.000000e+00> : vector<8xf32>
    %49 = vector.multi_reduction <add>, %48, %cst_21 [1] : vector<8x8xf32> to vector<8xf32>
    %50 = vector.shape_cast %49 : vector<8xf32> to vector<8x1xf32>
    %51 = tpu.reciprocal %50 {approx = true} : vector<8x1xf32> -> vector<8x1xf32>
    %52 = vector.broadcast %51 : vector<8x1xf32> to vector<8x8xf32>
    %53 = arith.mulf %48, %52 : vector<8x8xf32>
    %54 = arith.truncf %53 : vector<8x8xf32> to vector<8x8xbf16>
    %cst_22 = arith.constant dense<0.000000e+00> : vector<8x8xf32>
    %55 = tpu.matmul %54, %38, %cst_22 {dimension_numbers = #tpu.dot_dimension_numbers<[1], [0], [0], [1], [0, 0, 1, 1], [], []>} : vector<8x8xbf16>, vector<8x8xbf16>, vector<8x8xf32> -> vector<8x8xf32>
    %c0_23 = arith.constant 0 : index
    %c8 = arith.constant 8 : index
    %56 = vector.load %arg24[%c0_23, %c8] : memref<8x32xf32, #tpu.memory_space<vmem>>, vector<8x8xf32>
    tpu.vector_store %arg24[%c0_23, %c8], %55 {strides = array<i32>} : memref<8x32xf32, #tpu.memory_space<vmem>>, vector<8x8xf32>,
    %57 = vector.extract_strided_slice %12 {offsets = [0, 16], sizes = [8, 8], strides = [1, 1]} : vector<8x96xbf16> to vector<8x8xbf16>
    %58 = vector.extract_strided_slice %12 {offsets = [0, 48], sizes = [8, 8], strides = [1, 1]} : vector<8x96xbf16> to vector<8x8xbf16>
    %59 = vector.extract_strided_slice %12 {offsets = [0, 80], sizes = [8, 8], strides = [1, 1]} : vector<8x96xbf16> to vector<8x8xbf16>
    %cst_24 = arith.constant dense<0.000000e+00> : vector<8x8xf32>
    %60 = tpu.matmul %57, %58, %cst_24 {dimension_numbers = #tpu.dot_dimension_numbers<[1], [1], [0], [0], [0, 0, 1, 0], [], []>} : vector<8x8xbf16>, vector<8x8xbf16>, vector<8x8xf32> -> vector<8x8xf32>
    %cst_25 = arith.constant 0.353553385 : f32
    %61 = vector.broadcast %cst_25 : f32 to vector<8x8xf32>
    %62 = arith.mulf %60, %61 : vector<8x8xf32>
    %63 = vector.broadcast %14 : vector<1x8xf32> to vector<8x8xf32>
    %64 = arith.addf %62, %63 : vector<8x8xf32>
    %cst_26 = arith.constant dense<0xFF800000> : vector<8xf32>
    %65 = vector.multi_reduction <maximumf>, %64, %cst_26 [1] : vector<8x8xf32> to vector<8xf32>
    %66 = vector.shape_cast %65 : vector<8xf32> to vector<8x1xf32>
    %67 = vector.broadcast %66 : vector<8x1xf32> to vector<8x8xf32>
    %68 = arith.subf %64, %67 : vector<8x8xf32>
    %69 = math.exp %68 : vector<8x8xf32>
    %cst_27 = arith.constant dense<0.000000e+00> : vector<8xf32>
    %70 = vector.multi_reduction <add>, %69, %cst_27 [1] : vector<8x8xf32> to vector<8xf32>
    %71 = vector.shape_cast %70 : vector<8xf32> to vector<8x1xf32>
    %72 = tpu.reciprocal %71 {approx = true} : vector<8x1xf32> -> vector<8x1xf32>
    %73 = vector.broadcast %72 : vector<8x1xf32> to vector<8x8xf32>
    %74 = arith.mulf %69, %73 : vector<8x8xf32>
    %75 = arith.truncf %74 : vector<8x8xf32> to vector<8x8xbf16>
    %cst_28 = arith.constant dense<0.000000e+00> : vector<8x8xf32>
    %76 = tpu.matmul %75, %59, %cst_28 {dimension_numbers = #tpu.dot_dimension_numbers<[1], [0], [0], [1], [0, 0, 1, 1], [], []>} : vector<8x8xbf16>, vector<8x8xbf16>, vector<8x8xf32> -> vector<8x8xf32>
    %c0_29 = arith.constant 0 : index
    %c16 = arith.constant 16 : index
    %77 = vector.load %arg24[%c0_29, %c16] : memref<8x32xf32, #tpu.memory_space<vmem>>, vector<8x8xf32>
    tpu.vector_store %arg24[%c0_29, %c16], %76 {strides = array<i32>} : memref<8x32xf32, #tpu.memory_space<vmem>>, vector<8x8xf32>,
    %78 = vector.extract_strided_slice %12 {offsets = [0, 24], sizes = [8, 8], strides = [1, 1]} : vector<8x96xbf16> to vector<8x8xbf16>
    %79 = vector.extract_strided_slice %12 {offsets = [0, 56], sizes = [8, 8], strides = [1, 1]} : vector<8x96xbf16> to vector<8x8xbf16>
    %80 = vector.extract_strided_slice %12 {offsets = [0, 88], sizes = [8, 8], strides = [1, 1]} : vector<8x96xbf16> to vector<8x8xbf16>
    %cst_30 = arith.constant dense<0.000000e+00> : vector<8x8xf32>
    %81 = tpu.matmul %78, %79, %cst_30 {dimension_numbers = #tpu.dot_dimension_numbers<[1], [1], [0], [0], [0, 0, 1, 0], [], []>} : vector<8x8xbf16>, vector<8x8xbf16>, vector<8x8xf32> -> vector<8x8xf32>
    %cst_31 = arith.constant 0.353553385 : f32
    %82 = vector.broadcast %cst_31 : f32 to vector<8x8xf32>
    %83 = arith.mulf %81, %82 : vector<8x8xf32>
    %84 = vector.broadcast %14 : vector<1x8xf32> to vector<8x8xf32>
    %85 = arith.addf %83, %84 : vector<8x8xf32>
    %cst_32 = arith.constant dense<0xFF800000> : vector<8xf32>
    %86 = vector.multi_reduction <maximumf>, %85, %cst_32 [1] : vector<8x8xf32> to vector<8xf32>
    %87 = vector.shape_cast %86 : vector<8xf32> to vector<8x1xf32>
    %88 = vector.broadcast %87 : vector<8x1xf32> to vector<8x8xf32>
    %89 = arith.subf %85, %88 : vector<8x8xf32>
    %90 = math.exp %89 : vector<8x8xf32>
    %cst_33 = arith.constant dense<0.000000e+00> : vector<8xf32>
    %91 = vector.multi_reduction <add>, %90, %cst_33 [1] : vector<8x8xf32> to vector<8xf32>
    %92 = vector.shape_cast %91 : vector<8xf32> to vector<8x1xf32>
    %93 = tpu.reciprocal %92 {approx = true} : vector<8x1xf32> -> vector<8x1xf32>
    %94 = vector.broadcast %93 : vector<8x1xf32> to vector<8x8xf32>
    %95 = arith.mulf %90, %94 : vector<8x8xf32>
    %96 = arith.truncf %95 : vector<8x8xf32> to vector<8x8xbf16>
    %cst_34 = arith.constant dense<0.000000e+00> : vector<8x8xf32>
    %97 = tpu.matmul %96, %80, %cst_34 {dimension_numbers = #tpu.dot_dimension_numbers<[1], [0], [0], [1], [0, 0, 1, 1], [], []>} : vector<8x8xbf16>, vector<8x8xbf16>, vector<8x8xf32> -> vector<8x8xf32>
    %c0_35 = arith.constant 0 : index
    %c24 = arith.constant 24 : index
    %98 = vector.load %arg24[%c0_35, %c24] : memref<8x32xf32, #tpu.memory_space<vmem>>, vector<8x8xf32>
    tpu.vector_store %arg24[%c0_35, %c24], %97 {strides = array<i32>} : memref<8x32xf32, #tpu.memory_space<vmem>>, vector<8x8xf32>,
    %c0_36 = arith.constant 0 : index
    %c0_37 = arith.constant 0 : index
    %99 = vector.load %arg24[%c0_36, %c0_37] : memref<8x32xf32, #tpu.memory_space<vmem>>, vector<8x32xf32>
    %100 = arith.truncf %99 : vector<8x32xf32> to vector<8x32xbf16>
    %c0_38 = arith.constant 0 : index
    %c0_39 = arith.constant 0 : index
    %c0_40 = arith.constant 0 : index
    %101 = vector.load %arg6[%c0_38, %c0_39, %c0_40] : memref<1x32x32xbf16, #tpu.memory_space<vmem>>, vector<1x32x32xbf16>
    %102 = vector.shape_cast %101 : vector<1x32x32xbf16> to vector<32x32xbf16>
    %cst_41 = arith.constant dense<0.000000e+00> : vector<8x32xf32>
    %103 = tpu.matmul %100, %102, %cst_41 {dimension_numbers = #tpu.dot_dimension_numbers<[1], [0], [0], [1], [0, 0, 1, 1], [], []>} : vector<8x32xbf16>, vector<32x32xbf16>, vector<8x32xf32> -> vector<8x32xf32>
    %c0_42 = arith.constant 0 : index
    %c0_43 = arith.constant 0 : index
    %c0_44 = arith.constant 0 : index
    %104 = vector.load %arg7[%c0_42, %c0_43, %c0_44] : memref<1x1x32xf32, #tpu.memory_space<vmem>>, vector<1x1x32xf32>
    %105 = vector.shape_cast %104 : vector<1x1x32xf32> to vector<1x32xf32>
    %106 = vector.broadcast %105 : vector<1x32xf32> to vector<8x32xf32>
    %107 = arith.addf %103, %106 : vector<8x32xf32>
    %108 = arith.addf %3, %107 : vector<8x32xf32>
    %c0_45 = arith.constant 0 : index
    %c0_46 = arith.constant 0 : index
    %c0_47 = arith.constant 0 : index
    %109 = vector.load %arg8[%c0_45, %c0_46, %c0_47] : memref<1x1x32xf32, #tpu.memory_space<vmem>>, vector<1x1x32xf32>
    %110 = vector.shape_cast %109 : vector<1x1x32xf32> to vector<1x32xf32>
    %c0_48 = arith.constant 0 : index
    %c0_49 = arith.constant 0 : index
    %c0_50 = arith.constant 0 : index
    %111 = vector.load %arg9[%c0_48, %c0_49, %c0_50] : memref<1x1x32xf32, #tpu.memory_space<vmem>>, vector<1x1x32xf32>
    %112 = vector.shape_cast %111 : vector<1x1x32xf32> to vector<1x32xf32>
    %cst_51 = arith.constant dense<0.000000e+00> : vector<8xf32>
    %113 = vector.multi_reduction <add>, %108, %cst_51 [1] : vector<8x32xf32> to vector<8xf32>
    %114 = vector.shape_cast %113 : vector<8xf32> to vector<8x1xf32>
    %cst_52 = arith.constant 3.200000e+01 : f32
    %115 = vector.broadcast %cst_52 : f32 to vector<8x1xf32>
    %116 = arith.divf %114, %115 : vector<8x1xf32>
    %117 = vector.broadcast %116 : vector<8x1xf32> to vector<8x32xf32>
    %118 = arith.subf %108, %117 : vector<8x32xf32>
    %119 = arith.mulf %118, %118 : vector<8x32xf32>
    %cst_53 = arith.constant dense<0.000000e+00> : vector<8xf32>
    %120 = vector.multi_reduction <add>, %119, %cst_53 [1] : vector<8x32xf32> to vector<8xf32>
    %121 = vector.shape_cast %120 : vector<8xf32> to vector<8x1xf32>
    %cst_54 = arith.constant 3.200000e+01 : f32
    %122 = vector.broadcast %cst_54 : f32 to vector<8x1xf32>
    %123 = arith.divf %121, %122 : vector<8x1xf32>
    %124 = vector.broadcast %116 : vector<8x1xf32> to vector<8x32xf32>
    %125 = arith.subf %108, %124 : vector<8x32xf32>
    %cst_55 = arith.constant 9.99999996E-13 : f32
    %126 = vector.broadcast %cst_55 : f32 to vector<8x1xf32>
    %127 = arith.addf %123, %126 : vector<8x1xf32>
    %128 = math.rsqrt %127 : vector<8x1xf32>
    %129 = vector.broadcast %128 : vector<8x1xf32> to vector<8x32xf32>
    %130 = arith.mulf %125, %129 : vector<8x32xf32>
    %131 = vector.broadcast %110 : vector<1x32xf32> to vector<8x32xf32>
    %132 = arith.mulf %130, %131 : vector<8x32xf32>
    %133 = vector.broadcast %112 : vector<1x32xf32> to vector<8x32xf32>
    %134 = arith.addf %132, %133 : vector<8x32xf32>
    %135 = arith.truncf %134 : vector<8x32xf32> to vector<8x32xbf16>
    %c0_56 = arith.constant 0 : index
    %c0_57 = arith.constant 0 : index
    %c0_58 = arith.constant 0 : index
    %136 = vector.load %arg10[%c0_56, %c0_57, %c0_58] : memref<1x32x64xbf16, #tpu.memory_space<vmem>>, vector<1x32x64xbf16>
    %137 = vector.shape_cast %136 : vector<1x32x64xbf16> to vector<32x64xbf16>
    %cst_59 = arith.constant dense<0.000000e+00> : vector<8x64xf32>
    %138 = tpu.matmul %135, %137, %cst_59 {dimension_numbers = #tpu.dot_dimension_numbers<[1], [0], [0], [1], [0, 0, 1, 1], [], []>} : vector<8x32xbf16>, vector<32x64xbf16>, vector<8x64xf32> -> vector<8x64xf32>
    %c0_60 = arith.constant 0 : index
    %c0_61 = arith.constant 0 : index
    %c0_62 = arith.constant 0 : index
    %139 = vector.load %arg11[%c0_60, %c0_61, %c0_62] : memref<1x1x64xf32, #tpu.memory_space<vmem>>, vector<1x1x64xf32>
    %140 = vector.shape_cast %139 : vector<1x1x64xf32> to vector<1x64xf32>
    %141 = vector.broadcast %140 : vector<1x64xf32> to vector<8x64xf32>
    %142 = arith.addf %138, %141 : vector<8x64xf32>
    %cst_63 = arith.constant 5.000000e-01 : f32
    %143 = vector.broadcast %cst_63 : f32 to vector<8x64xf32>
    %144 = arith.mulf %143, %142 : vector<8x64xf32>
    %cst_64 = arith.constant 0.707106769 : f32
    %145 = vector.broadcast %cst_64 : f32 to vector<8x64xf32>
    %146 = arith.mulf %142, %145 : vector<8x64xf32>
    %147 = math.erf %146 : vector<8x64xf32>
    %cst_65 = arith.constant 1.000000e+00 : f32
    %148 = vector.broadcast %cst_65 : f32 to vector<8x64xf32>
    %149 = arith.addf %148, %147 : vector<8x64xf32>
    %150 = arith.mulf %144, %149 : vector<8x64xf32>
    %151 = arith.truncf %150 : vector<8x64xf32> to vector<8x64xbf16>
    %c0_66 = arith.constant 0 : index
    %c0_67 = arith.constant 0 : index
    %c0_68 = arith.constant 0 : index
    %152 = vector.load %arg12[%c0_66, %c0_67, %c0_68] : memref<1x64x32xbf16, #tpu.memory_space<vmem>>, vector<1x64x32xbf16>
    %153 = vector.shape_cast %152 : vector<1x64x32xbf16> to vector<64x32xbf16>
    %cst_69 = arith.constant dense<0.000000e+00> : vector<8x32xf32>
    %154 = tpu.matmul %151, %153, %cst_69 {dimension_numbers = #tpu.dot_dimension_numbers<[1], [0], [0], [1], [0, 0, 1, 1], [], []>} : vector<8x64xbf16>, vector<64x32xbf16>, vector<8x32xf32> -> vector<8x32xf32>
    %c0_70 = arith.constant 0 : index
    %c0_71 = arith.constant 0 : index
    %c0_72 = arith.constant 0 : index
    %155 = vector.load %arg13[%c0_70, %c0_71, %c0_72] : memref<1x1x32xf32, #tpu.memory_space<vmem>>, vector<1x1x32xf32>
    %156 = vector.shape_cast %155 : vector<1x1x32xf32> to vector<1x32xf32>
    %157 = vector.broadcast %156 : vector<1x32xf32> to vector<8x32xf32>
    %158 = arith.addf %154, %157 : vector<8x32xf32>
    %159 = arith.addf %134, %158 : vector<8x32xf32>
    %c0_73 = arith.constant 0 : index
    %c0_74 = arith.constant 0 : index
    %c0_75 = arith.constant 0 : index
    %160 = vector.load %arg14[%c0_73, %c0_74, %c0_75] : memref<1x1x32xf32, #tpu.memory_space<vmem>>, vector<1x1x32xf32>
    %161 = vector.shape_cast %160 : vector<1x1x32xf32> to vector<1x32xf32>
    %c0_76 = arith.constant 0 : index
    %c0_77 = arith.constant 0 : index
    %c0_78 = arith.constant 0 : index
    %162 = vector.load %arg15[%c0_76, %c0_77, %c0_78] : memref<1x1x32xf32, #tpu.memory_space<vmem>>, vector<1x1x32xf32>
    %163 = vector.shape_cast %162 : vector<1x1x32xf32> to vector<1x32xf32>
    %cst_79 = arith.constant dense<0.000000e+00> : vector<8xf32>
    %164 = vector.multi_reduction <add>, %159, %cst_79 [1] : vector<8x32xf32> to vector<8xf32>
    %165 = vector.shape_cast %164 : vector<8xf32> to vector<8x1xf32>
    %cst_80 = arith.constant 3.200000e+01 : f32
    %166 = vector.broadcast %cst_80 : f32 to vector<8x1xf32>
    %167 = arith.divf %165, %166 : vector<8x1xf32>
    %168 = vector.broadcast %167 : vector<8x1xf32> to vector<8x32xf32>
    %169 = arith.subf %159, %168 : vector<8x32xf32>
    %170 = arith.mulf %169, %169 : vector<8x32xf32>
    %cst_81 = arith.constant dense<0.000000e+00> : vector<8xf32>
    %171 = vector.multi_reduction <add>, %170, %cst_81 [1] : vector<8x32xf32> to vector<8xf32>
    %172 = vector.shape_cast %171 : vector<8xf32> to vector<8x1xf32>
    %cst_82 = arith.constant 3.200000e+01 : f32
    %173 = vector.broadcast %cst_82 : f32 to vector<8x1xf32>
    %174 = arith.divf %172, %173 : vector<8x1xf32>
    %175 = vector.broadcast %167 : vector<8x1xf32> to vector<8x32xf32>
    %176 = arith.subf %159, %175 : vector<8x32xf32>
    %cst_83 = arith.constant 9.99999996E-13 : f32
    %177 = vector.broadcast %cst_83 : f32 to vector<8x1xf32>
    %178 = arith.addf %174, %177 : vector<8x1xf32>
    %179 = math.rsqrt %178 : vector<8x1xf32>
    %180 = vector.broadcast %179 : vector<8x1xf32> to vector<8x32xf32>
    %181 = arith.mulf %176, %180 : vector<8x32xf32>
    %182 = vector.broadcast %161 : vector<1x32xf32> to vector<8x32xf32>
    %183 = arith.mulf %181, %182 : vector<8x32xf32>
    %184 = vector.broadcast %163 : vector<1x32xf32> to vector<8x32xf32>
    %185 = arith.addf %183, %184 : vector<8x32xf32>
    %c0_84 = arith.constant 0 : index
    %c0_85 = arith.constant 0 : index
    %186 = vector.load %arg23[%c0_84, %c0_85] : memref<8x32xf32, #tpu.memory_space<vmem>>, vector<8x32xf32>
    tpu.vector_store %arg23[%c0_84, %c0_85], %185 {strides = array<i32>} : memref<8x32xf32, #tpu.memory_space<vmem>>, vector<8x32xf32>,
    %c1_i32 = arith.constant 1 : i32
    %187 = arith.cmpi eq, %arg1, %c1_i32 : i32
    %188 = arith.extui %187 : i1 to i32
    %c0_i32_86 = arith.constant 0 : i32
    %189 = arith.cmpi ne, %188, %c0_i32_86 : i32
    scf.if %189 {
      %190 = vector.extract_strided_slice %185 {offsets = [0, 0], sizes = [1, 32], strides = [1, 1]} : vector<8x32xf32> to vector<1x32xf32>
      %191 = arith.truncf %190 : vector<1x32xf32> to vector<1x32xbf16>
      %c0_87 = arith.constant 0 : index
      %c0_88 = arith.constant 0 : index
      %192 = vector.load %arg16[%c0_87, %c0_88] : memref<32x32xbf16, #tpu.memory_space<vmem>>, vector<32x32xbf16>
      %cst_89 = arith.constant dense<0.000000e+00> : vector<1x32xf32>
      %193 = tpu.matmul %191, %192, %cst_89 {dimension_numbers = #tpu.dot_dimension_numbers<[1], [0], [0], [1], [0, 0, 1, 1], [], []>} : vector<1x32xbf16>, vector<32x32xbf16>, vector<1x32xf32> -> vector<1x32xf32>
      %c0_90 = arith.constant 0 : index
      %c0_91 = arith.constant 0 : index
      %194 = vector.load %arg17[%c0_90, %c0_91] : memref<1x32xf32, #tpu.memory_space<vmem>>, vector<1x32xf32>
      %195 = arith.addf %193, %194 : vector<1x32xf32>
      %196 = math.tanh %195 : vector<1x32xf32>
      %c0_92 = arith.constant 0 : index
      %c0_93 = arith.constant 0 : index
      %197 = vector.load %arg18[%c0_92, %c0_93] : memref<1x32xf32, #tpu.memory_space<vmem>>, vector<1x32xf32>
      %c0_94 = arith.constant 0 : index
      %c0_95 = arith.constant 0 : index
      %198 = vector.load %arg19[%c0_94, %c0_95] : memref<1x32xf32, #tpu.memory_space<vmem>>, vector<1x32xf32>
      %cst_96 = arith.constant dense<0.000000e+00> : vector<1xf32>
      %199 = vector.multi_reduction <add>, %196, %cst_96 [1] : vector<1x32xf32> to vector<1xf32>
      %200 = vector.shape_cast %199 : vector<1xf32> to vector<1x1xf32>
      %cst_97 = arith.constant 3.200000e+01 : f32
      %201 = vector.broadcast %cst_97 : f32 to vector<1x1xf32>
      %202 = arith.divf %200, %201 : vector<1x1xf32>
      %203 = vector.broadcast %202 : vector<1x1xf32> to vector<1x32xf32>
      %204 = arith.subf %196, %203 : vector<1x32xf32>
      %205 = arith.mulf %204, %204 : vector<1x32xf32>
      %cst_98 = arith.constant dense<0.000000e+00> : vector<1xf32>
      %206 = vector.multi_reduction <add>, %205, %cst_98 [1] : vector<1x32xf32> to vector<1xf32>
      %207 = vector.shape_cast %206 : vector<1xf32> to vector<1x1xf32>
      %cst_99 = arith.constant 3.200000e+01 : f32
      %208 = vector.broadcast %cst_99 : f32 to vector<1x1xf32>
      %209 = arith.divf %207, %208 : vector<1x1xf32>
      %210 = vector.broadcast %202 : vector<1x1xf32> to vector<1x32xf32>
      %211 = arith.subf %196, %210 : vector<1x32xf32>
      %cst_100 = arith.constant 9.99999974E-6 : f32
      %212 = vector.broadcast %cst_100 : f32 to vector<1x1xf32>
      %213 = arith.addf %209, %212 : vector<1x1xf32>
      %214 = math.rsqrt %213 : vector<1x1xf32>
      %215 = vector.broadcast %214 : vector<1x1xf32> to vector<1x32xf32>
      %216 = arith.mulf %211, %215 : vector<1x32xf32>
      %217 = arith.mulf %216, %197 : vector<1x32xf32>
      %218 = arith.addf %217, %198 : vector<1x32xf32>
      %219 = arith.truncf %218 : vector<1x32xf32> to vector<1x32xbf16>
      %c0_101 = arith.constant 0 : index
      %c0_102 = arith.constant 0 : index
      %220 = vector.load %arg20[%c0_101, %c0_102] : memref<32x128xbf16, #tpu.memory_space<vmem>>, vector<32x128xbf16>
      %cst_103 = arith.constant dense<0.000000e+00> : vector<1x128xf32>
      %221 = tpu.matmul %219, %220, %cst_103 {dimension_numbers = #tpu.dot_dimension_numbers<[1], [0], [0], [1], [0, 0, 1, 1], [], []>} : vector<1x32xbf16>, vector<32x128xbf16>, vector<1x128xf32> -> vector<1x128xf32>
      %c0_104 = arith.constant 0 : index
      %c0_105 = arith.constant 0 : index
      %222 = vector.load %arg21[%c0_104, %c0_105] : memref<1x128xf32, #tpu.memory_space<vmem>>, vector<1x128xf32>
      %223 = arith.addf %221, %222 : vector<1x128xf32>
      %224 = vector.shape_cast %223 : vector<1x128xf32> to vector<1x128xf32>
      %225 = vector.broadcast %224 : vector<1x128xf32> to vector<8x128xf32>
      %c0_106 = arith.constant 0 : index
      %c0_107 = arith.constant 0 : index
      %c0_108 = arith.constant 0 : index
      %226 = vector.load %arg22[%c0_106, %c0_107, %c0_108] : memref<1x8x128xf32, #tpu.memory_space<vmem>>, vector<1x8x128xf32>
      %227 = vector.shape_cast %226 : vector<1x8x128xf32> to vector<8x128xf32>
      %228 = vector.shape_cast %225 : vector<8x128xf32> to vector<1x8x128xf32>
      tpu.vector_store %arg22[%c0_106, %c0_107, %c0_108], %228 {strides = array<i32>} : memref<1x8x128xf32, #tpu.memory_space<vmem>>, vector<1x8x128xf32>,
    } else {
    }
    return
  }
  func.func @transform_0(%arg0: i32, %arg1: i32) -> (i32, i32, i32) {
    %c0_i32 = arith.constant 0 : i32
    %c0_i32_0 = arith.constant 0 : i32
    %c0_i32_1 = arith.constant 0 : i32
    return %arg0, %c0_i32, %c0_i32_0 : i32, i32, i32
  }
  func.func @transform_1(%arg0: i32, %arg1: i32) -> (i32, i32, i32) {
    %c0_i32 = arith.constant 0 : i32
    %c0_i32_0 = arith.constant 0 : i32
    %c0_i32_1 = arith.constant 0 : i32
    return %arg0, %c0_i32, %c0_i32_0 : i32, i32, i32
  }
  func.func @transform_2(%arg0: i32, %arg1: i32) -> (i32, i32, i32) {
    %c0_i32 = arith.constant 0 : i32
    %c0_i32_0 = arith.constant 0 : i32
    %c0_i32_1 = arith.constant 0 : i32
    return %arg1, %c0_i32, %c0_i32_0 : i32, i32, i32
  }
  func.func @transform_3(%arg0: i32, %arg1: i32) -> (i32, i32, i32) {
    %c0_i32 = arith.constant 0 : i32
    %c0_i32_0 = arith.constant 0 : i32
    %c0_i32_1 = arith.constant 0 : i32
    return %arg1, %c0_i32, %c0_i32_0 : i32, i32, i32
  }
  func.func @transform_4(%arg0: i32, %arg1: i32) -> (i32, i32, i32) {
    %c0_i32 = arith.constant 0 : i32
    %c0_i32_0 = arith.constant 0 : i32
    %c0_i32_1 = arith.constant 0 : i32
    return %arg1, %c0_i32, %c0_i32_0 : i32, i32, i32
  }
  func.func @transform_5(%arg0: i32, %arg1: i32) -> (i32, i32, i32) {
    %c0_i32 = arith.constant 0 : i32
    %c0_i32_0 = arith.constant 0 : i32
    %c0_i32_1 = arith.constant 0 : i32
    return %arg1, %c0_i32, %c0_i32_0 : i32, i32, i32
  }
  func.func @transform_6(%arg0: i32, %arg1: i32) -> (i32, i32, i32) {
    %c0_i32 = arith.constant 0 : i32
    %c0_i32_0 = arith.constant 0 : i32
    %c0_i32_1 = arith.constant 0 : i32
    return %arg1, %c0_i32, %c0_i32_0 : i32, i32, i32
  }
  func.func @transform_7(%arg0: i32, %arg1: i32) -> (i32, i32, i32) {
    %c0_i32 = arith.constant 0 : i32
    %c0_i32_0 = arith.constant 0 : i32
    %c0_i32_1 = arith.constant 0 : i32
    return %arg1, %c0_i32, %c0_i32_0 : i32, i32, i32
  }
  func.func @transform_8(%arg0: i32, %arg1: i32) -> (i32, i32, i32) {
    %c0_i32 = arith.constant 0 : i32
    %c0_i32_0 = arith.constant 0 : i32
    %c0_i32_1 = arith.constant 0 : i32
    return %arg1, %c0_i32, %c0_i32_0 : i32, i32, i32
  }
  func.func @transform_9(%arg0: i32, %arg1: i32) -> (i32, i32, i32) {
    %c0_i32 = arith.constant 0 : i32
    %c0_i32_0 = arith.constant 0 : i32
    %c0_i32_1 = arith.constant 0 : i32
    return %arg1, %c0_i32, %c0_i32_0 : i32, i32, i32
  }
  func.func @transform_10(%arg0: i32, %arg1: i32) -> (i32, i32, i32) {
    %c0_i32 = arith.constant 0 : i32
    %c0_i32_0 = arith.constant 0 : i32
    %c0_i32_1 = arith.constant 0 : i32
    return %arg1, %c0_i32, %c0_i32_0 : i32, i32, i32
  }
  func.func @transform_11(%arg0: i32, %arg1: i32) -> (i32, i32, i32) {
    %c0_i32 = arith.constant 0 : i32
    %c0_i32_0 = arith.constant 0 : i32
    %c0_i32_1 = arith.constant 0 : i32
    return %arg1, %c0_i32, %c0_i32_0 : i32, i32, i32
  }
  func.func @transform_12(%arg0: i32, %arg1: i32) -> (i32, i32, i32) {
    %c0_i32 = arith.constant 0 : i32
    %c0_i32_0 = arith.constant 0 : i32
    %c0_i32_1 = arith.constant 0 : i32
    return %arg1, %c0_i32, %c0_i32_0 : i32, i32, i32
  }
  func.func @transform_13(%arg0: i32, %arg1: i32) -> (i32, i32, i32) {
    %c0_i32 = arith.constant 0 : i32
    %c0_i32_0 = arith.constant 0 : i32
    %c0_i32_1 = arith.constant 0 : i32
    return %arg1, %c0_i32, %c0_i32_0 : i32, i32, i32
  }
  func.func @transform_14(%arg0: i32, %arg1: i32) -> (i32, i32) {
    %c0_i32 = arith.constant 0 : i32
    %c0_i32_0 = arith.constant 0 : i32
    %c0_i32_1 = arith.constant 0 : i32
    return %c0_i32, %c0_i32_0 : i32, i32
  }
  func.func @transform_15(%arg0: i32, %arg1: i32) -> (i32, i32) {
    %c0_i32 = arith.constant 0 : i32
    %c0_i32_0 = arith.constant 0 : i32
    %c0_i32_1 = arith.constant 0 : i32
    return %c0_i32, %c0_i32_0 : i32, i32
  }
  func.func @transform_16(%arg0: i32, %arg1: i32) -> (i32, i32) {
    %c0_i32 = arith.constant 0 : i32
    %c0_i32_0 = arith.constant 0 : i32
    %c0_i32_1 = arith.constant 0 : i32
    return %c0_i32, %c0_i32_0 : i32, i32
  }
  func.func @transform_17(%arg0: i32, %arg1: i32) -> (i32, i32) {
    %c0_i32 = arith.constant 0 : i32
    %c0_i32_0 = arith.constant 0 : i32
    %c0_i32_1 = arith.constant 0 : i32
    return %c0_i32, %c0_i32_0 : i32, i32
  }
  func.func @transform_18(%arg0: i32, %arg1: i32) -> (i32, i32) {
    %c0_i32 = arith.constant 0 : i32
    %c0_i32_0 = arith.constant 0 : i32
    %c0_i32_1 = arith.constant 0 : i32
    return %c0_i32, %c0_i32_0 : i32, i32
  }
  func.func @transform_19(%arg0: i32, %arg1: i32) -> (i32, i32) {
    %c0_i32 = arith.constant 0 : i32
    %c0_i32_0 = arith.constant 0 : i32
    %c0_i32_1 = arith.constant 0 : i32
    return %c0_i32, %c0_i32_0 : i32, i32
  }
  func.func @transform_20(%arg0: i32, %arg1: i32) -> (i32, i32, i32) {
    %c0_i32 = arith.constant 0 : i32
    %c0_i32_0 = arith.constant 0 : i32
    %c0_i32_1 = arith.constant 0 : i32
    return %arg0, %c0_i32, %c0_i32_0 : i32, i32, i32
  }
}

</mosaic_0001>

<llo_original>
// kernel: forward.1
$region0: #{forward.1}
  #allocation0 [shape = 'u32[]', space=smem, size = 0x4, offset = 0x4, fixed_abs, tag = 'smem constant byte address 0x4 - core index']
  #allocation1 [shape = 'u32[144,128]{1,0:T(1,128)}', space=vmem, size = 0x12000, scoped, tag = 'internal scratch']
  #allocation2 [shape = 'f32[8,32]{1,0:T(8,128)}', space=vmem, size = 0x1000, scoped, tag = 'scratch operand']
  #allocation3 [shape = 'f32[8,32]{1,0:T(8,128)}', space=vmem, size = 0x1000, scoped, tag = 'scratch operand']
  %s0 = inlined_call_operand.vmem [shape: f32[2,8,32], index: 0, kind: input, shape index: {}]
  %s1 = inlined_call_operand.vmem [shape: f32[2,1,8], index: 1, kind: input, shape index: {}]
  %s2 = inlined_call_operand.vmem [shape: bf16[2,32,96], index: 2, kind: input, shape index: {}]
  %s3 = inlined_call_operand.vmem [shape: f32[2,1,96], index: 3, kind: input, shape index: {}]
  %s4 = inlined_call_operand.vmem [shape: bf16[2,32,32], index: 4, kind: input, shape index: {}]
  %s5 = inlined_call_operand.vmem [shape: f32[2,1,32], index: 5, kind: input, shape index: {}]
  %s6 = inlined_call_operand.vmem [shape: f32[2,1,32], index: 6, kind: input, shape index: {}]
  %s7 = inlined_call_operand.vmem [shape: f32[2,1,32], index: 7, kind: input, shape index: {}]
  %s8 = inlined_call_operand.vmem [shape: bf16[2,32,64], index: 8, kind: input, shape index: {}]
  %s9 = inlined_call_operand.vmem [shape: f32[2,1,64], index: 9, kind: input, shape index: {}]
  %s10 = inlined_call_operand.vmem [shape: bf16[2,64,32], index: 10, kind: input, shape index: {}]
  %s11 = inlined_call_operand.vmem [shape: f32[2,1,32], index: 11, kind: input, shape index: {}]
  %s12 = inlined_call_operand.vmem [shape: f32[2,1,32], index: 12, kind: input, shape index: {}]
  %s13 = inlined_call_operand.vmem [shape: f32[2,1,32], index: 13, kind: input, shape index: {}]
  %s14 = inlined_call_operand.vmem [shape: bf16[32,32], index: 14, kind: input, shape index: {}]
  %s15 = inlined_call_operand.vmem [shape: f32[1,32], index: 15, kind: input, shape index: {}]
  %s16 = inlined_call_operand.vmem [shape: f32[1,32], index: 16, kind: input, shape index: {}]
  %s17 = inlined_call_operand.vmem [shape: f32[1,32], index: 17, kind: input, shape index: {}]
  %s18 = inlined_call_operand.vmem [shape: bf16[32,128], index: 18, kind: input, shape index: {}]
  %s19 = inlined_call_operand.vmem [shape: f32[1,128], index: 19, kind: input, shape index: {}]
  %s20 = inlined_call_operand.vmem [shape: f32[2,8,128], index: 20, kind: output, shape index: {}]
  %s21 = sld [smem:[#allocation0]]
  $region121: #{forward.1} parent=0
    _
  %s23 = ssub.s32 1, %s21
  %s24 = scalar_select 0, %s23, %s21
  loop: start=0, step=1, limit=6
  $region2: #{forward.1} parent=0 // loop_pre_header
    _
  $region3: #{forward.1} parent=0 // loop_header
    %s26 = sphi 0, %s30
    %p27 = scmp.ge.s32.totalorder %s26, 6
    %s33 = sphi 0, %s45
    %s34 = sphi 0, %s41
    %s35 = sphi 0, %s33
    %s36 = sphi 0, %s34
    %s37 = sphi 0, %s35
    %s38 = sphi 0, %s36
    %s48 = sphi 0, %s50
    %s51 = sphi 0, %s48
    %s52 = sphi 0, %s51
    %s68 = sphi 0, %s52
    %s74 = sphi 0, %s76
    %s77 = sphi 0, %s74
    %s78 = sphi 0, %s77
    %s94 = sphi 0, %s78
    %s100 = sphi 0, %s102
    %s103 = sphi 0, %s100
    %s104 = sphi 0, %s103
    %s120 = sphi 0, %s104
    %s126 = sphi 0, %s128
    %s129 = sphi 0, %s126
    %s130 = sphi 0, %s129
    %s146 = sphi 0, %s130
    %s152 = sphi 0, %s154
    %s155 = sphi 0, %s152
    %s156 = sphi 0, %s155
    %s172 = sphi 0, %s156
    %s178 = sphi 0, %s180
    %s181 = sphi 0, %s178
    %s182 = sphi 0, %s181
    %s198 = sphi 0, %s182
    %s204 = sphi 0, %s206
    %s207 = sphi 0, %s204
    %s208 = sphi 0, %s207
    %s224 = sphi 0, %s208
    %s230 = sphi 0, %s232
    %s233 = sphi 0, %s230
    %s234 = sphi 0, %s233
    %s250 = sphi 0, %s234
    %s256 = sphi 0, %s258
    %s259 = sphi 0, %s256
    %s260 = sphi 0, %s259
    %s276 = sphi 0, %s260
    %s282 = sphi 0, %s284
    %s285 = sphi 0, %s282
    %s286 = sphi 0, %s285
    %s302 = sphi 0, %s286
    %s308 = sphi 0, %s310
    %s311 = sphi 0, %s308
    %s312 = sphi 0, %s311
    %s328 = sphi 0, %s312
    %s334 = sphi 0, %s336
    %s337 = sphi 0, %s334
    %s338 = sphi 0, %s337
    %s354 = sphi 0, %s338
    %s360 = sphi 0, %s362
    %s363 = sphi 0, %s360
    %s364 = sphi 0, %s363
    %s380 = sphi 0, %s364
    %s386 = sphi 0, %s388
    %s389 = sphi 0, %s386
    %s390 = sphi 0, %s389
    %s406 = sphi 0, %s390
    %s410 = sphi 0, %s410
    %s412 = sphi 0, %s410
    %s413 = sphi 0, %s412
    %s427 = sphi 0, %s413
    %s431 = sphi 0, %s431
    %s433 = sphi 0, %s431
    %s434 = sphi 0, %s433
    %s448 = sphi 0, %s434
    %s452 = sphi 0, %s452
    %s454 = sphi 0, %s452
    %s455 = sphi 0, %s454
    %s469 = sphi 0, %s455
    %s473 = sphi 0, %s473
    %s475 = sphi 0, %s473
    %s476 = sphi 0, %s475
    %s490 = sphi 0, %s476
    %s494 = sphi 0, %s494
    %s496 = sphi 0, %s494
    %s497 = sphi 0, %s496
    %s511 = sphi 0, %s497
    %s515 = sphi 0, %s515
    %s517 = sphi 0, %s515
    %s518 = sphi 0, %s517
    %s532 = sphi 0, %s518
    %s538 = sphi 0, %s540
    %s541 = sphi 0, %s538
    %s542 = sphi 0, %s541
    %s558 = sphi 0, %s542
  $region4: #{forward.1} parent=0 // loop_header_branch
    %29 = sbr.rel (%p27) target = $region8
  $region5: #{forward.1} parent=0 // loop_body
    %s31 = ssub.s32 %s26, 1
    %s32 = ssub.s32 %s26, 2
    %s39 = sadd.s32 1, %s34
    %p40 = scmp.ge.s32.totalorder %s39, 2
    %s41 = scalar_select %p40, 0, %s39
    %s42 = sadd.s32 1, %s33
    %s43 = scalar_select %p40, %s42, %s33
    %p44 = scmp.ge.s32.totalorder %s43, 2
    %s45 = scalar_select %p44, 0, %s43
    %s46 = ssub.s32 %s33, %s45
    %p47 = scmp.eq.s32.totalorder %s46, 0
    %s49 = sadd.s32 %s48, 1
    %s50 = scalar_select %p47, %s48, %s49
    %p53 = pneg %p47
    %p54 = scmp.eq.s32.totalorder %s26, 3
    %p55 = por %p53, %p54
    %p56 = scmp.ne.s32.totalorder %s48, %s51
    %p57 = scmp.eq.s32.totalorder %s26, 0
    %p58 = por %p56, %p57
    %p59 = scmp.ne.s32.totalorder %s48, %s51
    %p60 = scmp.eq.s32.totalorder %s31, 3
    %p61 = por %p59, %p60
    %p62 = scmp.ne.s32.totalorder %s51, %s52
    %p63 = scmp.eq.s32.totalorder %s31, 0
    %p64 = por %p62, %p63
    %p65 = scmp.ne.s32.totalorder %s51, %s52
    %p66 = scmp.eq.s32.totalorder %s32, 3
    %p67 = por %p65, %p66
    %p69 = scmp.ne.s32.totalorder %s52, %s68
    %p70 = scmp.eq.s32.totalorder %s32, 0
    %p71 = por %p69, %p70
    %s72 = ssub.s32 %s33, %s45
    %p73 = scmp.eq.s32.totalorder %s72, 0
    %s75 = sadd.s32 %s74, 1
    %s76 = scalar_select %p73, %s74, %s75
    %p79 = pneg %p73
    %p80 = scmp.eq.s32.totalorder %s26, 3
    %p81 = por %p79, %p80
    %p82 = scmp.ne.s32.totalorder %s74, %s77
    %p83 = scmp.eq.s32.totalorder %s26, 0
    %p84 = por %p82, %p83
    %p85 = scmp.ne.s32.totalorder %s74, %s77
    %p86 = scmp.eq.s32.totalorder %s31, 3
    %p87 = por %p85, %p86
    %p88 = scmp.ne.s32.totalorder %s77, %s78
    %p89 = scmp.eq.s32.totalorder %s31, 0
    %p90 = por %p88, %p89
    %p91 = scmp.ne.s32.totalorder %s77, %s78
    %p92 = scmp.eq.s32.totalorder %s32, 3
    %p93 = por %p91, %p92
    %p95 = scmp.ne.s32.totalorder %s78, %s94
    %p96 = scmp.eq.s32.totalorder %s32, 0
    %p97 = por %p95, %p96
    %s98 = ssub.s32 %s34, %s41
    %p99 = scmp.eq.s32.totalorder %s98, 0
    %s101 = sadd.s32 %s100, 1
    %s102 = scalar_select %p99, %s100, %s101
    %p105 = pneg %p99
    %p106 = scmp.eq.s32.totalorder %s26, 3
    %p107 = por %p105, %p106
    %p108 = scmp.ne.s32.totalorder %s100, %s103
    %p109 = scmp.eq.s32.totalorder %s26, 0
    %p110 = por %p108, %p109
    %p111 = scmp.ne.s32.totalorder %s100, %s103
    %p112 = scmp.eq.s32.totalorder %s31, 3
    %p113 = por %p111, %p112
    %p114 = scmp.ne.s32.totalorder %s103, %s104
    %p115 = scmp.eq.s32.totalorder %s31, 0
    %p116 = por %p114, %p115
    %p117 = scmp.ne.s32.totalorder %s103, %s104
    %p118 = scmp.eq.s32.totalorder %s32, 3
    %p119 = por %p117, %p118
    %p121 = scmp.ne.s32.totalorder %s104, %s120
    %p122 = scmp.eq.s32.totalorder %s32, 0
    %p123 = por %p121, %p122
    %s124 = ssub.s32 %s34, %s41
    %p125 = scmp.eq.s32.totalorder %s124, 0
    %s127 = sadd.s32 %s126, 1
    %s128 = scalar_select %p125, %s126, %s127
    %p131 = pneg %p125
    %p132 = scmp.eq.s32.totalorder %s26, 3
    %p133 = por %p131, %p132
    %p134 = scmp.ne.s32.totalorder %s126, %s129
    %p135 = scmp.eq.s32.totalorder %s26, 0
    %p136 = por %p134, %p135
    %p137 = scmp.ne.s32.totalorder %s126, %s129
    %p138 = scmp.eq.s32.totalorder %s31, 3
    %p139 = por %p137, %p138
    %p140 = scmp.ne.s32.totalorder %s129, %s130
    %p141 = scmp.eq.s32.totalorder %s31, 0
    %p142 = por %p140, %p141
    %p143 = scmp.ne.s32.totalorder %s129, %s130
    %p144 = scmp.eq.s32.totalorder %s32, 3
    %p145 = por %p143, %p144
    %p147 = scmp.ne.s32.totalorder %s130, %s146
    %p148 = scmp.eq.s32.totalorder %s32, 0
    %p149 = por %p147, %p148
    %s150 = ssub.s32 %s34, %s41
    %p151 = scmp.eq.s32.totalorder %s150, 0
    %s153 = sadd.s32 %s152, 1
    %s154 = scalar_select %p151, %s152, %s153
    %p157 = pneg %p151
    %p158 = scmp.eq.s32.totalorder %s26, 3
    %p159 = por %p157, %p158
    %p160 = scmp.ne.s32.totalorder %s152, %s155
    %p161 = scmp.eq.s32.totalorder %s26, 0
    %p162 = por %p160, %p161
    %p163 = scmp.ne.s32.totalorder %s152, %s155
    %p164 = scmp.eq.s32.totalorder %s31, 3
    %p165 = por %p163, %p164
    %p166 = scmp.ne.s32.totalorder %s155, %s156
    %p167 = scmp.eq.s32.totalorder %s31, 0
    %p168 = por %p166, %p167
    %p169 = scmp.ne.s32.totalorder %s155, %s156
    %p170 = scmp.eq.s32.totalorder %s32, 3
    %p171 = por %p169, %p170
    %p173 = scmp.ne.s32.totalorder %s156, %s172
    %p174 = scmp.eq.s32.totalorder %s32, 0
    %p175 = por %p173, %p174
    %s176 = ssub.s32 %s34, %s41
    %p177 = scmp.eq.s32.totalorder %s176, 0
    %s179 = sadd.s32 %s178, 1
    %s180 = scalar_select %p177, %s178, %s179
    %p183 = pneg %p177
    %p184 = scmp.eq.s32.totalorder %s26, 3
    %p185 = por %p183, %p184
    %p186 = scmp.ne.s32.totalorder %s178, %s181
    %p187 = scmp.eq.s32.totalorder %s26, 0
    %p188 = por %p186, %p187
    %p189 = scmp.ne.s32.totalorder %s178, %s181
    %p190 = scmp.eq.s32.totalorder %s31, 3
    %p191 = por %p189, %p190
    %p192 = scmp.ne.s32.totalorder %s181, %s182
    %p193 = scmp.eq.s32.totalorder %s31, 0
    %p194 = por %p192, %p193
    %p195 = scmp.ne.s32.totalorder %s181, %s182
    %p196 = scmp.eq.s32.totalorder %s32, 3
    %p197 = por %p195, %p196
    %p199 = scmp.ne.s32.totalorder %s182, %s198
    %p200 = scmp.eq.s32.totalorder %s32, 0
    %p201 = por %p199, %p200
    %s202 = ssub.s32 %s34, %s41
    %p203 = scmp.eq.s32.totalorder %s202, 0
    %s205 = sadd.s32 %s204, 1
    %s206 = scalar_select %p203, %s204, %s205
    %p209 = pneg %p203
    %p210 = scmp.eq.s32.totalorder %s26, 3
    %p211 = por %p209, %p210
    %p212 = scmp.ne.s32.totalorder %s204, %s207
    %p213 = scmp.eq.s32.totalorder %s26, 0
    %p214 = por %p212, %p213
    %p215 = scmp.ne.s32.totalorder %s204, %s207
    %p216 = scmp.eq.s32.totalorder %s31, 3
    %p217 = por %p215, %p216
    %p218 = scmp.ne.s32.totalorder %s207, %s208
    %p219 = scmp.eq.s32.totalorder %s31, 0
    %p220 = por %p218, %p219
    %p221 = scmp.ne.s32.totalorder %s207, %s208
    %p222 = scmp.eq.s32.totalorder %s32, 3
    %p223 = por %p221, %p222
    %p225 = scmp.ne.s32.totalorder %s208, %s224
    %p226 = scmp.eq.s32.totalorder %s32, 0
    %p227 = por %p225, %p226
    %s228 = ssub.s32 %s34, %s41
    %p229 = scmp.eq.s32.totalorder %s228, 0
    %s231 = sadd.s32 %s230, 1
    %s232 = scalar_select %p229, %s230, %s231
    %p235 = pneg %p229
    %p236 = scmp.eq.s32.totalorder %s26, 3
    %p237 = por %p235, %p236
    %p238 = scmp.ne.s32.totalorder %s230, %s233
    %p239 = scmp.eq.s32.totalorder %s26, 0
    %p240 = por %p238, %p239
    %p241 = scmp.ne.s32.totalorder %s230, %s233
    %p242 = scmp.eq.s32.totalorder %s31, 3
    %p243 = por %p241, %p242
    %p244 = scmp.ne.s32.totalorder %s233, %s234
    %p245 = scmp.eq.s32.totalorder %s31, 0
    %p246 = por %p244, %p245
    %p247 = scmp.ne.s32.totalorder %s233, %s234
    %p248 = scmp.eq.s32.totalorder %s32, 3
    %p249 = por %p247, %p248
    %p251 = scmp.ne.s32.totalorder %s234, %s250
    %p252 = scmp.eq.s32.totalorder %s32, 0
    %p253 = por %p251, %p252
    %s254 = ssub.s32 %s34, %s41
    %p255 = scmp.eq.s32.totalorder %s254, 0
    %s257 = sadd.s32 %s256, 1
    %s258 = scalar_select %p255, %s256, %s257
    %p261 = pneg %p255
    %p262 = scmp.eq.s32.totalorder %s26, 3
    %p263 = por %p261, %p262
    %p264 = scmp.ne.s32.totalorder %s256, %s259
    %p265 = scmp.eq.s32.totalorder %s26, 0
    %p266 = por %p264, %p265
    %p267 = scmp.ne.s32.totalorder %s256, %s259
    %p268 = scmp.eq.s32.totalorder %s31, 3
    %p269 = por %p267, %p268
    %p270 = scmp.ne.s32.totalorder %s259, %s260
    %p271 = scmp.eq.s32.totalorder %s31, 0
    %p272 = por %p270, %p271
    %p273 = scmp.ne.s32.totalorder %s259, %s260
    %p274 = scmp.eq.s32.totalorder %s32, 3
    %p275 = por %p273, %p274
    %p277 = scmp.ne.s32.totalorder %s260, %s276
    %p278 = scmp.eq.s32.totalorder %s32, 0
    %p279 = por %p277, %p278
    %s280 = ssub.s32 %s34, %s41
    %p281 = scmp.eq.s32.totalorder %s280, 0
    %s283 = sadd.s32 %s282, 1
    %s284 = scalar_select %p281, %s282, %s283
    %p287 = pneg %p281
    %p288 = scmp.eq.s32.totalorder %s26, 3
    %p289 = por %p287, %p288
    %p290 = scmp.ne.s32.totalorder %s282, %s285
    %p291 = scmp.eq.s32.totalorder %s26, 0
    %p292 = por %p290, %p291
    %p293 = scmp.ne.s32.totalorder %s282, %s285
    %p294 = scmp.eq.s32.totalorder %s31, 3
    %p295 = por %p293, %p294
    %p296 = scmp.ne.s32.totalorder %s285, %s286
    %p297 = scmp.eq.s32.totalorder %s31, 0
    %p298 = por %p296, %p297
    %p299 = scmp.ne.s32.totalorder %s285, %s286
    %p300 = scmp.eq.s32.totalorder %s32, 3
    %p301 = por %p299, %p300
    %p303 = scmp.ne.s32.totalorder %s286, %s302
    %p304 = scmp.eq.s32.totalorder %s32, 0
    %p305 = por %p303, %p304
    %s306 = ssub.s32 %s34, %s41
    %p307 = scmp.eq.s32.totalorder %s306, 0
    %s309 = sadd.s32 %s308, 1
    %s310 = scalar_select %p307, %s308, %s309
    %p313 = pneg %p307
    %p314 = scmp.eq.s32.totalorder %s26, 3
    %p315 = por %p313, %p314
    %p316 = scmp.ne.s32.totalorder %s308, %s311
    %p317 = scmp.eq.s32.totalorder %s26, 0
    %p318 = por %p316, %p317
    %p319 = scmp.ne.s32.totalorder %s308, %s311
    %p320 = scmp.eq.s32.totalorder %s31, 3
    %p321 = por %p319, %p320
    %p322 = scmp.ne.s32.totalorder %s311, %s312
    %p323 = scmp.eq.s32.totalorder %s31, 0
    %p324 = por %p322, %p323
    %p325 = scmp.ne.s32.totalorder %s311, %s312
    %p326 = scmp.eq.s32.totalorder %s32, 3
    %p327 = por %p325, %p326
    %p329 = scmp.ne.s32.totalorder %s312, %s328
    %p330 = scmp.eq.s32.totalorder %s32, 0
    %p331 = por %p329, %p330
    %s332 = ssub.s32 %s34, %s41
    %p333 = scmp.eq.s32.totalorder %s332, 0
    %s335 = sadd.s32 %s334, 1
    %s336 = scalar_select %p333, %s334, %s335
    %p339 = pneg %p333
    %p340 = scmp.eq.s32.totalorder %s26, 3
    %p341 = por %p339, %p340
    %p342 = scmp.ne.s32.totalorder %s334, %s337
    %p343 = scmp.eq.s32.totalorder %s26, 0
    %p344 = por %p342, %p343
    %p345 = scmp.ne.s32.totalorder %s334, %s337
    %p346 = scmp.eq.s32.totalorder %s31, 3
    %p347 = por %p345, %p346
    %p348 = scmp.ne.s32.totalorder %s337, %s338
    %p349 = scmp.eq.s32.totalorder %s31, 0
    %p350 = por %p348, %p349
    %p351 = scmp.ne.s32.totalorder %s337, %s338
    %p352 = scmp.eq.s32.totalorder %s32, 3
    %p353 = por %p351, %p352
    %p355 = scmp.ne.s32.totalorder %s338, %s354
    %p356 = scmp.eq.s32.totalorder %s32, 0
    %p357 = por %p355, %p356
    %s358 = ssub.s32 %s34, %s41
    %p359 = scmp.eq.s32.totalorder %s358, 0
    %s361 = sadd.s32 %s360, 1
    %s362 = scalar_select %p359, %s360, %s361
    %p365 = pneg %p359
    %p366 = scmp.eq.s32.totalorder %s26, 3
    %p367 = por %p365, %p366
    %p368 = scmp.ne.s32.totalorder %s360, %s363
    %p369 = scmp.eq.s32.totalorder %s26, 0
    %p370 = por %p368, %p369
    %p371 = scmp.ne.s32.totalorder %s360, %s363
    %p372 = scmp.eq.s32.totalorder %s31, 3
    %p373 = por %p371, %p372
    %p374 = scmp.ne.s32.totalorder %s363, %s364
    %p375 = scmp.eq.s32.totalorder %s31, 0
    %p376 = por %p374, %p375
    %p377 = scmp.ne.s32.totalorder %s363, %s364
    %p378 = scmp.eq.s32.totalorder %s32, 3
    %p379 = por %p377, %p378
    %p381 = scmp.ne.s32.totalorder %s364, %s380
    %p382 = scmp.eq.s32.totalorder %s32, 0
    %p383 = por %p381, %p382
    %s384 = ssub.s32 %s34, %s41
    %p385 = scmp.eq.s32.totalorder %s384, 0
    %s387 = sadd.s32 %s386, 1
    %s388 = scalar_select %p385, %s386, %s387
    %p391 = pneg %p385
    %p392 = scmp.eq.s32.totalorder %s26, 3
    %p393 = por %p391, %p392
    %p394 = scmp.ne.s32.totalorder %s386, %s389
    %p395 = scmp.eq.s32.totalorder %s26, 0
    %p396 = por %p394, %p395
    %p397 = scmp.ne.s32.totalorder %s386, %s389
    %p398 = scmp.eq.s32.totalorder %s31, 3
    %p399 = por %p397, %p398
    %p400 = scmp.ne.s32.totalorder %s389, %s390
    %p401 = scmp.eq.s32.totalorder %s31, 0
    %p402 = por %p400, %p401
    %p403 = scmp.ne.s32.totalorder %s389, %s390
    %p404 = scmp.eq.s32.totalorder %s32, 3
    %p405 = por %p403, %p404
    %p407 = scmp.ne.s32.totalorder %s390, %s406
    %p408 = scmp.eq.s32.totalorder %s32, 0
    %p409 = por %p407, %p408
    %s411 = sadd.s32 %s410, 1
    %p414 = scmp.eq.s32.totalorder %s26, 3
    %p415 = scmp.ne.s32.totalorder %s410, %s412
    %p416 = scmp.eq.s32.totalorder %s26, 0
    %p417 = por %p415, %p416
    %p418 = scmp.ne.s32.totalorder %s410, %s412
    %p419 = scmp.eq.s32.totalorder %s31, 3
    %p420 = por %p418, %p419
    %p421 = scmp.ne.s32.totalorder %s412, %s413
    %p422 = scmp.eq.s32.totalorder %s31, 0
    %p423 = por %p421, %p422
    %p424 = scmp.ne.s32.totalorder %s412, %s413
    %p425 = scmp.eq.s32.totalorder %s32, 3
    %p426 = por %p424, %p425
    %p428 = scmp.ne.s32.totalorder %s413, %s427
    %p429 = scmp.eq.s32.totalorder %s32, 0
    %p430 = por %p428, %p429
    %s432 = sadd.s32 %s431, 1
    %p435 = scmp.eq.s32.totalorder %s26, 3
    %p436 = scmp.ne.s32.totalorder %s431, %s433
    %p437 = scmp.eq.s32.totalorder %s26, 0
    %p438 = por %p436, %p437
    %p439 = scmp.ne.s32.totalorder %s431, %s433
    %p440 = scmp.eq.s32.totalorder %s31, 3
    %p441 = por %p439, %p440
    %p442 = scmp.ne.s32.totalorder %s433, %s434
    %p443 = scmp.eq.s32.totalorder %s31, 0
    %p444 = por %p442, %p443
    %p445 = scmp.ne.s32.totalorder %s433, %s434
    %p446 = scmp.eq.s32.totalorder %s32, 3
    %p447 = por %p445, %p446
    %p449 = scmp.ne.s32.totalorder %s434, %s448
    %p450 = scmp.eq.s32.totalorder %s32, 0
    %p451 = por %p449, %p450
    %s453 = sadd.s32 %s452, 1
    %p456 = scmp.eq.s32.totalorder %s26, 3
    %p457 = scmp.ne.s32.totalorder %s452, %s454
    %p458 = scmp.eq.s32.totalorder %s26, 0
    %p459 = por %p457, %p458
    %p460 = scmp.ne.s32.totalorder %s452, %s454
    %p461 = scmp.eq.s32.totalorder %s31, 3
    %p462 = por %p460, %p461
    %p463 = scmp.ne.s32.totalorder %s454, %s455
    %p464 = scmp.eq.s32.totalorder %s31, 0
    %p465 = por %p463, %p464
    %p466 = scmp.ne.s32.totalorder %s454, %s455
    %p467 = scmp.eq.s32.totalorder %s32, 3
    %p468 = por %p466, %p467
    %p470 = scmp.ne.s32.totalorder %s455, %s469
    %p471 = scmp.eq.s32.totalorder %s32, 0
    %p472 = por %p470, %p471
    %s474 = sadd.s32 %s473, 1
    %p477 = scmp.eq.s32.totalorder %s26, 3
    %p478 = scmp.ne.s32.totalorder %s473, %s475
    %p479 = scmp.eq.s32.totalorder %s26, 0
    %p480 = por %p478, %p479
    %p481 = scmp.ne.s32.totalorder %s473, %s475
    %p482 = scmp.eq.s32.totalorder %s31, 3
    %p483 = por %p481, %p482
    %p484 = scmp.ne.s32.totalorder %s475, %s476
    %p485 = scmp.eq.s32.totalorder %s31, 0
    %p486 = por %p484, %p485
    %p487 = scmp.ne.s32.totalorder %s475, %s476
    %p488 = scmp.eq.s32.totalorder %s32, 3
    %p489 = por %p487, %p488
    %p491 = scmp.ne.s32.totalorder %s476, %s490
    %p492 = scmp.eq.s32.totalorder %s32, 0
    %p493 = por %p491, %p492
    %s495 = sadd.s32 %s494, 1
    %p498 = scmp.eq.s32.totalorder %s26, 3
    %p499 = scmp.ne.s32.totalorder %s494, %s496
    %p500 = scmp.eq.s32.totalorder %s26, 0
    %p501 = por %p499, %p500
    %p502 = scmp.ne.s32.totalorder %s494, %s496
    %p503 = scmp.eq.s32.totalorder %s31, 3
    %p504 = por %p502, %p503
    %p505 = scmp.ne.s32.totalorder %s496, %s497
    %p506 = scmp.eq.s32.totalorder %s31, 0
    %p507 = por %p505, %p506
    %p508 = scmp.ne.s32.totalorder %s496, %s497
    %p509 = scmp.eq.s32.totalorder %s32, 3
    %p510 = por %p508, %p509
    %p512 = scmp.ne.s32.totalorder %s497, %s511
    %p513 = scmp.eq.s32.totalorder %s32, 0
    %p514 = por %p512, %p513
    %s516 = sadd.s32 %s515, 1
    %p519 = scmp.eq.s32.totalorder %s26, 3
    %p520 = scmp.ne.s32.totalorder %s515, %s517
    %p521 = scmp.eq.s32.totalorder %s26, 0
    %p522 = por %p520, %p521
    %p523 = scmp.ne.s32.totalorder %s515, %s517
    %p524 = scmp.eq.s32.totalorder %s31, 3
    %p525 = por %p523, %p524
    %p526 = scmp.ne.s32.totalorder %s517, %s518
    %p527 = scmp.eq.s32.totalorder %s31, 0
    %p528 = por %p526, %p527
    %p529 = scmp.ne.s32.totalorder %s517, %s518
    %p530 = scmp.eq.s32.totalorder %s32, 3
    %p531 = por %p529, %p530
    %p533 = scmp.ne.s32.totalorder %s518, %s532
    %p534 = scmp.eq.s32.totalorder %s32, 0
    %p535 = por %p533, %p534
    %s536 = ssub.s32 %s33, %s45
    %p537 = scmp.eq.s32.totalorder %s536, 0
    %s539 = sadd.s32 %s538, 1
    %s540 = scalar_select %p537, %s538, %s539
    %p543 = pneg %p537
    %p544 = scmp.eq.s32.totalorder %s26, 3
    %p545 = por %p543, %p544
    %p546 = scmp.ne.s32.totalorder %s538, %s541
    %p547 = scmp.eq.s32.totalorder %s26, 0
    %p548 = por %p546, %p547
    %p549 = scmp.ne.s32.totalorder %s538, %s541
    %p550 = scmp.eq.s32.totalorder %s31, 3
    %p551 = por %p549, %p550
    %p552 = scmp.ne.s32.totalorder %s541, %s542
    %p553 = scmp.eq.s32.totalorder %s31, 0
    %p554 = por %p552, %p553
    %p555 = scmp.ne.s32.totalorder %s541, %s542
    %p556 = scmp.eq.s32.totalorder %s32, 3
    %p557 = por %p555, %p556
    %p559 = scmp.ne.s32.totalorder %s542, %s558
    %p560 = scmp.eq.s32.totalorder %s32, 0
    %p561 = por %p559, %p560
    %p562 = scmp.le.s32.totalorder 1, %s26
    %p563 = scmp.lt.s32.totalorder %s26, 5
    %p564 = pnand %p562, %p563
    %p565 = pneg %p564
    // Predicated region
    $region9: #{forward.1} parent=5 // pred_check
      _
    $region10: #{forward.1} parent=5 // pred_check_branch
      %567 = sbr.rel (%p564) target = $region12
    $region11: #{forward.1} parent=5 // pred_region
      %s568 = ssub.s32 %s26, 1
      // Predicated region
      $region13: #{forward.1} parent=11 // pred_check
        %p569 = pneg %p423
      $region14: #{forward.1} parent=11 // pred_check_branch
        %571 = sbr.rel (%p569) target = $region16
      $region15: #{forward.1} parent=11 // pred_region
        _
      $region16: #{forward.1} parent=11 // pred_fallthru
        _
      // Predicated region
      $region17: #{forward.1} parent=11 // pred_check
        %p572 = pneg %p444
      $region18: #{forward.1} parent=11 // pred_check_branch
        %574 = sbr.rel (%p572) target = $region20
      $region19: #{forward.1} parent=11 // pred_region
        _
      $region20: #{forward.1} parent=11 // pred_fallthru
        _
      // Predicated region
      $region21: #{forward.1} parent=11 // pred_check
        %p575 = pneg %p465
      $region22: #{forward.1} parent=11 // pred_check_branch
        %577 = sbr.rel (%p575) target = $region24
      $region23: #{forward.1} parent=11 // pred_region
        _
      $region24: #{forward.1} parent=11 // pred_fallthru
        _
      // Predicated region
      $region25: #{forward.1} parent=11 // pred_check
        %p578 = pneg %p486
      $region26: #{forward.1} parent=11 // pred_check_branch
        %580 = sbr.rel (%p578) target = $region28
      $region27: #{forward.1} parent=11 // pred_region
        _
      $region28: #{forward.1} parent=11 // pred_fallthru
        _
      // Predicated region
      $region29: #{forward.1} parent=11 // pred_check
        %p581 = pneg %p507
      $region30: #{forward.1} parent=11 // pred_check_branch
        %583 = sbr.rel (%p581) target = $region32
      $region31: #{forward.1} parent=11 // pred_region
        _
      $region32: #{forward.1} parent=11 // pred_fallthru
        _
      // Predicated region
      $region33: #{forward.1} parent=11 // pred_check
        %p584 = pneg %p528
      $region34: #{forward.1} parent=11 // pred_check_branch
        %586 = sbr.rel (%p584) target = $region36
      $region35: #{forward.1} parent=11 // pred_region
        _
      $region36: #{forward.1} parent=11 // pred_fallthru
        _
    $region12: #{forward.1} parent=5 // pred_fallthru
      _
    %p587 = scmp.lt.s32.totalorder %s26, 4
    // Predicated region
    $region37: #{forward.1} parent=5 // pred_check
      %p588 = pneg %p587
    $region38: #{forward.1} parent=5 // pred_check_branch
      %590 = sbr.rel (%p588) target = $region40
    $region39: #{forward.1} parent=5 // pred_region
      // Predicated region
      $region41: #{forward.1} parent=39 // pred_check
        %p591 = pneg %p58
      $region42: #{forward.1} parent=39 // pred_check_branch
        %593 = sbr.rel (%p591) target = $region44
      $region43: #{forward.1} parent=39 // pred_region
        %p594 = scmp.lt.s32.totalorder %s33, 1
        %s595 = scalar_select %p594, %s33, 1
        %s596 = smul.addr %s595, 8
        %s597 = scalar_lea.vmem %s0, %s596
      $region44: #{forward.1} parent=39 // pred_fallthru
        _
      // Predicated region
      $region45: #{forward.1} parent=39 // pred_check
        %p598 = pneg %p84
      $region46: #{forward.1} parent=39 // pred_check_branch
        %600 = sbr.rel (%p598) target = $region48
      $region47: #{forward.1} parent=39 // pred_region
        %p601 = scmp.lt.s32.totalorder %s33, 1
        %s602 = scalar_select %p601, %s33, 1
        %s603 = scalar_lea.vmem %s1, %s602
      $region48: #{forward.1} parent=39 // pred_fallthru
        _
      // Predicated region
      $region49: #{forward.1} parent=39 // pred_check
        %p604 = pneg %p110
      $region50: #{forward.1} parent=39 // pred_check_branch
        %606 = sbr.rel (%p604) target = $region52
      $region51: #{forward.1} parent=39 // pred_region
        %p607 = scmp.lt.s32.totalorder %s34, 1
        %s608 = scalar_select %p607, %s34, 1
        %s609 = smul.addr %s608, 4
        %s610 = smul.addr %s609, 4
        %s611 = scalar_lea.vmem %s2, %s610
      $region52: #{forward.1} parent=39 // pred_fallthru
        _
      // Predicated region
      $region53: #{forward.1} parent=39 // pred_check
        %p612 = pneg %p136
      $region54: #{forward.1} parent=39 // pred_check_branch
        %614 = sbr.rel (%p612) target = $region56
      $region55: #{forward.1} parent=39 // pred_region
        %p615 = scmp.lt.s32.totalorder %s34, 1
        %s616 = scalar_select %p615, %s34, 1
        %s617 = scalar_lea.vmem %s3, %s616
      $region56: #{forward.1} parent=39 // pred_fallthru
        _
      // Predicated region
      $region57: #{forward.1} parent=39 // pred_check
        %p618 = pneg %p162
      $region58: #{forward.1} parent=39 // pred_check_branch
        %620 = sbr.rel (%p618) target = $region60
      $region59: #{forward.1} parent=39 // pred_region
        %p621 = scmp.lt.s32.totalorder %s34, 1
        %s622 = scalar_select %p621, %s34, 1
        %s623 = smul.addr %s622, 4
        %s624 = smul.addr %s623, 4
        %s625 = scalar_lea.vmem %s4, %s624
      $region60: #{forward.1} parent=39 // pred_fallthru
        _
      // Predicated region
      $region61: #{forward.1} parent=39 // pred_check
        %p626 = pneg %p188
      $region62: #{forward.1} parent=39 // pred_check_branch
        %628 = sbr.rel (%p626) target = $region64
      $region63: #{forward.1} parent=39 // pred_region
        %p629 = scmp.lt.s32.totalorder %s34, 1
        %s630 = scalar_select %p629, %s34, 1
        %s631 = scalar_lea.vmem %s5, %s630
      $region64: #{forward.1} parent=39 // pred_fallthru
        _
      // Predicated region
      $region65: #{forward.1} parent=39 // pred_check
        %p632 = pneg %p214
      $region66: #{forward.1} parent=39 // pred_check_branch
        %634 = sbr.rel (%p632) target = $region68
      $region67: #{forward.1} parent=39 // pred_region
        %p635 = scmp.lt.s32.totalorder %s34, 1
        %s636 = scalar_select %p635, %s34, 1
        %s637 = scalar_lea.vmem %s6, %s636
      $region68: #{forward.1} parent=39 // pred_fallthru
        _
      // Predicated region
      $region69: #{forward.1} parent=39 // pred_check
        %p638 = pneg %p240
      $region70: #{forward.1} parent=39 // pred_check_branch
        %640 = sbr.rel (%p638) target = $region72
      $region71: #{forward.1} parent=39 // pred_region
        %p641 = scmp.lt.s32.totalorder %s34, 1
        %s642 = scalar_select %p641, %s34, 1
        %s643 = scalar_lea.vmem %s7, %s642
      $region72: #{forward.1} parent=39 // pred_fallthru
        _
      // Predicated region
      $region73: #{forward.1} parent=39 // pred_check
        %p644 = pneg %p266
      $region74: #{forward.1} parent=39 // pred_check_branch
        %646 = sbr.rel (%p644) target = $region76
      $region75: #{forward.1} parent=39 // pred_region
        %p647 = scmp.lt.s32.totalorder %s34, 1
        %s648 = scalar_select %p647, %s34, 1
        %s649 = smul.addr %s648, 4
        %s650 = smul.addr %s649, 4
        %s651 = scalar_lea.vmem %s8, %s650
      $region76: #{forward.1} parent=39 // pred_fallthru
        _
      // Predicated region
      $region77: #{forward.1} parent=39 // pred_check
        %p652 = pneg %p292
      $region78: #{forward.1} parent=39 // pred_check_branch
        %654 = sbr.rel (%p652) target = $region80
      $region79: #{forward.1} parent=39 // pred_region
        %p655 = scmp.lt.s32.totalorder %s34, 1
        %s656 = scalar_select %p655, %s34, 1
        %s657 = scalar_lea.vmem %s9, %s656
      $region80: #{forward.1} parent=39 // pred_fallthru
        _
      // Predicated region
      $region81: #{forward.1} parent=39 // pred_check
        %p658 = pneg %p318
      $region82: #{forward.1} parent=39 // pred_check_branch
        %660 = sbr.rel (%p658) target = $region84
      $region83: #{forward.1} parent=39 // pred_region
        %p661 = scmp.lt.s32.totalorder %s34, 1
        %s662 = scalar_select %p661, %s34, 1
        %s663 = smul.addr %s662, 8
        %s664 = smul.addr %s663, 4
        %s665 = scalar_lea.vmem %s10, %s664
      $region84: #{forward.1} parent=39 // pred_fallthru
        _
      // Predicated region
      $region85: #{forward.1} parent=39 // pred_check
        %p666 = pneg %p344
      $region86: #{forward.1} parent=39 // pred_check_branch
        %668 = sbr.rel (%p666) target = $region88
      $region87: #{forward.1} parent=39 // pred_region
        %p669 = scmp.lt.s32.totalorder %s34, 1
        %s670 = scalar_select %p669, %s34, 1
        %s671 = scalar_lea.vmem %s11, %s670
      $region88: #{forward.1} parent=39 // pred_fallthru
        _
      // Predicated region
      $region89: #{forward.1} parent=39 // pred_check
        %p672 = pneg %p370
      $region90: #{forward.1} parent=39 // pred_check_branch
        %674 = sbr.rel (%p672) target = $region92
      $region91: #{forward.1} parent=39 // pred_region
        %p675 = scmp.lt.s32.totalorder %s34, 1
        %s676 = scalar_select %p675, %s34, 1
        %s677 = scalar_lea.vmem %s12, %s676
      $region92: #{forward.1} parent=39 // pred_fallthru
        _
      // Predicated region
      $region93: #{forward.1} parent=39 // pred_check
        %p678 = pneg %p396
      $region94: #{forward.1} parent=39 // pred_check_branch
        %680 = sbr.rel (%p678) target = $region96
      $region95: #{forward.1} parent=39 // pred_region
        %p681 = scmp.lt.s32.totalorder %s34, 1
        %s682 = scalar_select %p681, %s34, 1
        %s683 = scalar_lea.vmem %s13, %s682
      $region96: #{forward.1} parent=39 // pred_fallthru
        _
    $region40: #{forward.1} parent=5 // pred_fallthru
      _
    %p684 = scmp.le.s32.totalorder 1, %s26
    %p685 = scmp.lt.s32.totalorder %s26, 5
    %p686 = pnand %p684, %p685
    %p687 = pneg %p686
    // Predicated region
    $region97: #{forward.1} parent=5 // pred_check
      _
    $region98: #{forward.1} parent=5 // pred_check_branch
      %689 = sbr.rel (%p686) target = $region100
    $region99: #{forward.1} parent=5 // pred_region
      %s690 = ssub.s32 %s26, 1
      %p691 = scmp.lt.s32.totalorder %s35, 1
      %s692 = scalar_select %p691, %s35, 1
      %s693 = smul.addr %s692, 8
      %s694 = scalar_lea.vmem %s0, %s693
      %p695 = pneg %p64
      %p696 = pneg %p61
      %p697 = scmp.lt.s32.totalorder %s35, 1
      %s698 = scalar_select %p697, %s35, 1
      %s699 = scalar_lea.vmem %s1, %s698
      %p700 = pneg %p90
      %p701 = pneg %p87
      %p702 = scmp.lt.s32.totalorder %s36, 1
      %s703 = scalar_select %p702, %s36, 1
      %s704 = smul.addr %s703, 4
      %s705 = smul.addr %s704, 4
      %s706 = scalar_lea.vmem %s2, %s705
      %p707 = pneg %p116
      %p708 = pneg %p113
      %p709 = scmp.lt.s32.totalorder %s36, 1
      %s710 = scalar_select %p709, %s36, 1
      %s711 = scalar_lea.vmem %s3, %s710
      %p712 = pneg %p142
      %p713 = pneg %p139
      %p714 = scmp.lt.s32.totalorder %s36, 1
      %s715 = scalar_select %p714, %s36, 1
      %s716 = smul.addr %s715, 4
      %s717 = smul.addr %s716, 4
      %s718 = scalar_lea.vmem %s4, %s717
      %p719 = pneg %p168
      %p720 = pneg %p165
      %p721 = scmp.lt.s32.totalorder %s36, 1
      %s722 = scalar_select %p721, %s36, 1
      %s723 = scalar_lea.vmem %s5, %s722
      %p724 = pneg %p194
      %p725 = pneg %p191
      %p726 = scmp.lt.s32.totalorder %s36, 1
      %s727 = scalar_select %p726, %s36, 1
      %s728 = scalar_lea.vmem %s6, %s727
      %p729 = pneg %p220
      %p730 = pneg %p217
      %p731 = scmp.lt.s32.totalorder %s36, 1
      %s732 = scalar_select %p731, %s36, 1
      %s733 = scalar_lea.vmem %s7, %s732
      %p734 = pneg %p246
      %p735 = pneg %p243
      %p736 = scmp.lt.s32.totalorder %s36, 1
      %s737 = scalar_select %p736, %s36, 1
      %s738 = smul.addr %s737, 4
      %s739 = smul.addr %s738, 4
      %s740 = scalar_lea.vmem %s8, %s739
      %p741 = pneg %p272
      %p742 = pneg %p269
      %p743 = scmp.lt.s32.totalorder %s36, 1
      %s744 = scalar_select %p743, %s36, 1
      %s745 = scalar_lea.vmem %s9, %s744
      %p746 = pneg %p298
      %p747 = pneg %p295
      %p748 = scmp.lt.s32.totalorder %s36, 1
      %s749 = scalar_select %p748, %s36, 1
      %s750 = smul.addr %s749, 8
      %s751 = smul.addr %s750, 4
      %s752 = scalar_lea.vmem %s10, %s751
      %p753 = pneg %p324
      %p754 = pneg %p321
      %p755 = scmp.lt.s32.totalorder %s36, 1
      %s756 = scalar_select %p755, %s36, 1
      %s757 = scalar_lea.vmem %s11, %s756
      %p758 = pneg %p350
      %p759 = pneg %p347
      %p760 = scmp.lt.s32.totalorder %s36, 1
      %s761 = scalar_select %p760, %s36, 1
      %s762 = scalar_lea.vmem %s12, %s761
      %p763 = pneg %p376
      %p764 = pneg %p373
      %p765 = scmp.lt.s32.totalorder %s36, 1
      %s766 = scalar_select %p765, %s36, 1
      %s767 = scalar_lea.vmem %s13, %s766
      %p768 = pneg %p402
      %p769 = pneg %p399
      %p770 = pneg %p423
      %p771 = pneg %p420
      %p772 = pneg %p444
      %p773 = pneg %p441
      %p774 = pneg %p465
      %p775 = pneg %p462
      %p776 = pneg %p486
      %p777 = pneg %p483
      %p778 = pneg %p507
      %p779 = pneg %p504
      %p780 = pneg %p528
      %p781 = pneg %p525
      %p782 = pneg %p554
      %p783 = pneg %p551
      %p784 = scmp.lt.s32.totalorder %s35, 1
      %s785 = scalar_select %p784, %s35, 1
      %s786 = smul.addr %s785, 8
      %s787 = scalar_lea.vmem %s20, %s786
      %p788 = scmp.lt.s32.totalorder %s35, 1
      %s789 = scalar_select %p788, %s35, 1
      %s790 = smul.addr %s789, 8
      %s791 = scalar_lea.vmem %s0, %s790
      %p792 = scmp.lt.s32.totalorder %s35, 1
      %s793 = scalar_select %p792, %s35, 1
      %s794 = scalar_lea.vmem %s1, %s793
      %p795 = scmp.lt.s32.totalorder %s36, 1
      %s796 = scalar_select %p795, %s36, 1
      %s797 = smul.addr %s796, 4
      %s798 = smul.addr %s797, 4
      %s799 = scalar_lea.vmem %s2, %s798
      %p800 = scmp.lt.s32.totalorder %s36, 1
      %s801 = scalar_select %p800, %s36, 1
      %s802 = scalar_lea.vmem %s3, %s801
      %p803 = scmp.lt.s32.totalorder %s36, 1
      %s804 = scalar_select %p803, %s36, 1
      %s805 = smul.addr %s804, 4
      %s806 = smul.addr %s805, 4
      %s807 = scalar_lea.vmem %s4, %s806
      %p808 = scmp.lt.s32.totalorder %s36, 1
      %s809 = scalar_select %p808, %s36, 1
      %s810 = scalar_lea.vmem %s5, %s809
      %p811 = scmp.lt.s32.totalorder %s36, 1
      %s812 = scalar_select %p811, %s36, 1
      %s813 = scalar_lea.vmem %s6, %s812
      %p814 = scmp.lt.s32.totalorder %s36, 1
      %s815 = scalar_select %p814, %s36, 1
      %s816 = scalar_lea.vmem %s7, %s815
      %p817 = scmp.lt.s32.totalorder %s36, 1
      %s818 = scalar_select %p817, %s36, 1
      %s819 = smul.addr %s818, 4
      %s820 = smul.addr %s819, 4
      %s821 = scalar_lea.vmem %s8, %s820
      %p822 = scmp.lt.s32.totalorder %s36, 1
      %s823 = scalar_select %p822, %s36, 1
      %s824 = scalar_lea.vmem %s9, %s823
      %p825 = scmp.lt.s32.totalorder %s36, 1
      %s826 = scalar_select %p825, %s36, 1
      %s827 = smul.addr %s826, 8
      %s828 = smul.addr %s827, 4
      %s829 = scalar_lea.vmem %s10, %s828
      %p830 = scmp.lt.s32.totalorder %s36, 1
      %s831 = scalar_select %p830, %s36, 1
      %s832 = scalar_lea.vmem %s11, %s831
      %p833 = scmp.lt.s32.totalorder %s36, 1
      %s834 = scalar_select %p833, %s36, 1
      %s835 = scalar_lea.vmem %s12, %s834
      %p836 = scmp.lt.s32.totalorder %s36, 1
      %s837 = scalar_select %p836, %s36, 1
      %s838 = scalar_lea.vmem %s13, %s837
      %p839 = scmp.lt.s32.totalorder %s35, 1
      %s840 = scalar_select %p839, %s35, 1
      %s841 = smul.addr %s840, 8
      %s842 = scalar_lea.vmem %s20, %s841
      %p844 = scmp.eq.s32.totalorder %s36, 0
      // Predicated region
      $region101: #{forward.1} parent=99 // pred_check
        %p845 = pneg %p844
      $region102: #{forward.1} parent=99 // pred_check_branch
        %847 = sbr.rel (%p845) target = $region104
      $region103: #{forward.1} parent=99 // pred_region
        %v848 = vld [vmem:[%s791] sm:$0xff]
        %vm849 = vcmask 261120
        %850 = vst.msk [vmem:[#allocation2] sm:$0xff] %vm849, %v848
      $region104: #{forward.1} parent=99 // pred_fallthru
        _
      %v851 = vld [vmem:[#allocation2] sm:$0xff]
      %v852 = vpack.c.bf16 %v851, %v851
      %v853 = vld [vmem:[%s799] sm:$0xf]
      %v854 = vld [vmem:[%s799 + $0x4] sm:$0xf]
      %v855 = vld [vmem:[%s799 + $0x8] sm:$0xf]
      %v856 = vld [vmem:[%s799 + $0xc] sm:$0xf]
      %v857 = vld [vmem:[%s802] sm:$0x1]
      %v859 = vlaneseq
      %v860 = vshrl.u32 %v859, 7
      %v861 = vsub.s32 0, %v860
      %v862 = vrot.slane %v857, %v861
      %v868 = vunpack.c.l.b16 %v853
      %v869 = vunpack.c.l.b16 %v854
      %v870 = vunpack.c.l.b16 %v855
      %v871 = vunpack.c.l.b16 %v856
      %v872 = vpack.c.b16 %v869, %v868
      %v873 = vpack.c.b16 %v871, %v870
      %vm876 = vcmask 261120
      %v878 = vsel %vm876, %v852, 0
      %880 = vmatprep.subr.bf16.mxu0 0
      %881 = vmatpush1.bf16.msra.mxu0 %v872
      %882 = vmatprep.subr.bf16.mxu0 0
      %883 = vmatpush1.bf16.msra.mxu0 %v873
      %884 = vmatprep.subr.bf16.mxu0 0
      %885 = vmatpush1.bf16.msra.mxu0 0
      %886 = vmatprep.subr.bf16.mxu0 0
      %887 = vmatpush1.bf16.msra.mxu0 0
      %888 = vmatprep.subr.bf16.mxu0 0
      %889 = vmatpush1.bf16.msra.mxu0 0
      %890 = vmatprep.subr.bf16.mxu0 0
      %891 = vmatpush1.bf16.msra.mxu0 0
      %892 = vmatprep.subr.bf16.mxu0 0
      %893 = vmatpush1.bf16.msra.mxu0 0
      %894 = vmatprep.subr.bf16.mxu0 0
      %895 = vmatpush1.bf16.msra.mxu0 0
      %896 = vmatprep.subr.bf16.mxu0 0
      %897 = vmatpush1.bf16.msra.mxu0 0
      %898 = vmatprep.subr.bf16.mxu0 0
      %899 = vmatpush1.bf16.msra.mxu0 0
      %900 = vmatprep.subr.bf16.mxu0 0
      %901 = vmatpush1.bf16.msra.mxu0 0
      %902 = vmatprep.subr.bf16.mxu0 0
      %903 = vmatpush1.bf16.msra.mxu0 0
      %904 = vmatprep.subr.bf16.mxu0 0
      %905 = vmatpush1.bf16.msra.mxu0 0
      %906 = vmatprep.subr.bf16.mxu0 0
      %907 = vmatpush1.bf16.msra.mxu0 0
      %908 = vmatprep.subr.bf16.mxu0 0
      %909 = vmatpush1.bf16.msra.mxu0 0
      %910 = vmatprep.subr.bf16.mxu0 0
      %911 = vmatpush1.bf16.msra.mxu0 0
      %912 = vmatprep.mubr.bf16.mxu0 0
      %913 = vmatmul.mubr.bf16.gmra.mrb[0].mxu0 %v878
      %v914 = vpop.f32.mrb[0].mxu0
      %v915 = vadd.f32 %v862, %v914
      %v916 = vpop.f32.mrb[0].mxu0
      %v917 = vpop.f32.mrb[0].mxu0
      %v918 = vpop.f32.mrb[0].mxu0
      %919 = vdwg.mxu0
      %v920 = vpack.c.bf16 %v915, %v915
      %v921 = vld [vmem:[%s794] sm:$0x1]
      %923 = vrot.lane.b32.xlu0 %v920, 96
      %v924 = vpop.permute.xlu0 %923
      %vm925 = vcmask 64512
      %v927 = vsel %vm925, %v920, 0
      %v930 = vsel %vm925, %v924, 0
      %932 = vmatprep.subr.bf16.mxu0 0
      %933 = vmatpush1.bf16.xpose.msra.mxu0 %v930
      %934 = vmatprep.subr.bf16.mxu0 0
      %935 = vmatpush1.bf16.xpose.msra.mxu0 0
      %936 = vmatprep.subr.bf16.mxu0 0
      %937 = vmatpush1.bf16.xpose.msra.mxu0 0
      %938 = vmatprep.subr.bf16.mxu0 0
      %939 = vmatpush1.bf16.xpose.msra.mxu0 0
      %940 = vmatprep.subr.bf16.mxu0 0
      %941 = vmatpush1.bf16.xpose.msra.mxu0 0
      %942 = vmatprep.subr.bf16.mxu0 0
      %943 = vmatpush1.bf16.xpose.msra.mxu0 0
      %944 = vmatprep.subr.bf16.mxu0 0
      %945 = vmatpush1.bf16.xpose.msra.mxu0 0
      %946 = vmatprep.subr.bf16.mxu0 0
      %947 = vmatpush1.bf16.xpose.msra.mxu0 0
      %948 = vmatprep.subr.bf16.mxu0 0
      %949 = vmatpush1.bf16.xpose.msra.mxu0 0
      %950 = vmatprep.subr.bf16.mxu0 0
      %951 = vmatpush1.bf16.xpose.msra.mxu0 0
      %952 = vmatprep.subr.bf16.mxu0 0
      %953 = vmatpush1.bf16.xpose.msra.mxu0 0
      %954 = vmatprep.subr.bf16.mxu0 0
      %955 = vmatpush1.bf16.xpose.msra.mxu0 0
      %956 = vmatprep.subr.bf16.mxu0 0
      %957 = vmatpush1.bf16.xpose.msra.mxu0 0
      %958 = vmatprep.subr.bf16.mxu0 0
      %959 = vmatpush1.bf16.xpose.msra.mxu0 0
      %960 = vmatprep.subr.bf16.mxu0 0
      %961 = vmatpush1.bf16.xpose.msra.mxu0 0
      %962 = vmatprep.subr.bf16.mxu0 0
      %963 = vmatpush1.bf16.xpose.msra.mxu0 0
      %964 = vmatprep.mubr.bf16.mxu0 0
      %965 = vmatmul.mubr.bf16.gmra.mrb[0].mxu0 %v927
      %v966 = vpop.f32.mrb[0].mxu0
      %v967 = vadd.f32 0.0, %v966
      %v968 = vpop.f32.mrb[0].mxu0
      %v969 = vpop.f32.mrb[0].mxu0
      %v970 = vpop.f32.mrb[0].mxu0
      %971 = vdwg.mxu0
      %v972 = vmul.f32 %v967, 0.35355338
      %v974 = vlaneseq
      %v975 = vshrl.u32 %v974, 7
      %v976 = vsub.s32 0, %v975
      %v977 = vrot.slane %v921, %v976
      %v979 = vadd.f32 %v972, %v977
      %v980 = vsel %vm925, %v979, -inf
      %981 = vmax.xlane.f32.xlu0 %v980
      %v982 = vpop.xlane.xlu0 %981
      %v983 = vsub.f32 %v979, %v982
      %v984 = vmul.f32 %v983, 1.442695
      %v985 = vpow.pop %v984
      %v986 = vsel %vm925, %v985, 0.0
      %987 = vadd.xlane.f32.xlu0 %v986
      %v988 = vpop.xlane.xlu0 %987
      %v989 = vrcp.pop %v988
      %v990 = vmul.f32 %v985, %v989
      %v991 = vpack.c.bf16 %v990, %v990
      %992 = vrot.lane.b32.xlu0 %v920, 64
      %v993 = vpop.permute.xlu0 %992
      %v995 = vsel %vm925, %v991, 0
      %vm997 = vcmask 1043456
      %v999 = vsel %vm997, %v993, 0
      %1001 = vmatprep.subr.bf16.mxu0 0
      %1002 = vmatpush1.bf16.msra.mxu0 %v999
      %1003 = vmatprep.subr.bf16.mxu0 0
      %1004 = vmatpush1.bf16.msra.mxu0 0
      %1005 = vmatprep.subr.bf16.mxu0 0
      %1006 = vmatpush1.bf16.msra.mxu0 0
      %1007 = vmatprep.subr.bf16.mxu0 0
      %1008 = vmatpush1.bf16.msra.mxu0 0
      %1009 = vmatprep.subr.bf16.mxu0 0
      %1010 = vmatpush1.bf16.msra.mxu0 0
      %1011 = vmatprep.subr.bf16.mxu0 0
      %1012 = vmatpush1.bf16.msra.mxu0 0
      %1013 = vmatprep.subr.bf16.mxu0 0
      %1014 = vmatpush1.bf16.msra.mxu0 0
      %1015 = vmatprep.subr.bf16.mxu0 0
      %1016 = vmatpush1.bf16.msra.mxu0 0
      %1017 = vmatprep.subr.bf16.mxu0 0
      %1018 = vmatpush1.bf16.msra.mxu0 0
      %1019 = vmatprep.subr.bf16.mxu0 0
      %1020 = vmatpush1.bf16.msra.mxu0 0
      %1021 = vmatprep.subr.bf16.mxu0 0
      %1022 = vmatpush1.bf16.msra.mxu0 0
      %1023 = vmatprep.subr.bf16.mxu0 0
      %1024 = vmatpush1.bf16.msra.mxu0 0
      %1025 = vmatprep.subr.bf16.mxu0 0
      %1026 = vmatpush1.bf16.msra.mxu0 0
      %1027 = vmatprep.subr.bf16.mxu0 0
      %1028 = vmatpush1.bf16.msra.mxu0 0
      %1029 = vmatprep.subr.bf16.mxu0 0
      %1030 = vmatpush1.bf16.msra.mxu0 0
      %1031 = vmatprep.subr.bf16.mxu0 0
      %1032 = vmatpush1.bf16.msra.mxu0 0
      %1033 = vmatprep.mubr.bf16.mxu0 0
      %1034 = vmatmul.mubr.bf16.gmra.mrb[0].mxu0 %v995
      %v1035 = vpop.f32.mrb[0].mxu0
      %v1036 = vadd.f32 0.0, %v1035
      %v1037 = vpop.f32.mrb[0].mxu0
      %v1038 = vpop.f32.mrb[0].mxu0
      %v1039 = vpop.f32.mrb[0].mxu0
      %1040 = vdwg.mxu0
      %1041 = vst.msk [vmem:[#allocation3] sm:$0xff] %vm925, %v1036
      %1042 = vrot.lane.b32.xlu0 %v920, 120
      %v1043 = vpop.permute.xlu0 %1042
      %1044 = vrot.lane.b32.xlu0 %v920, 88
      %v1045 = vpop.permute.xlu0 %1044
      %v1047 = vsel %vm925, %v1043, 0
      %v1050 = vsel %vm925, %v1045, 0
      %1052 = vmatprep.subr.bf16.mxu0 0
      %1053 = vmatpush1.bf16.xpose.msra.mxu0 %v1050
      %1054 = vmatprep.subr.bf16.mxu0 0
      %1055 = vmatpush1.bf16.xpose.msra.mxu0 0
      %1056 = vmatprep.subr.bf16.mxu0 0
      %1057 = vmatpush1.bf16.xpose.msra.mxu0 0
      %1058 = vmatprep.subr.bf16.mxu0 0
      %1059 = vmatpush1.bf16.xpose.msra.mxu0 0
      %1060 = vmatprep.subr.bf16.mxu0 0
      %1061 = vmatpush1.bf16.xpose.msra.mxu0 0
      %1062 = vmatprep.subr.bf16.mxu0 0
      %1063 = vmatpush1.bf16.xpose.msra.mxu0 0
      %1064 = vmatprep.subr.bf16.mxu0 0
      %1065 = vmatpush1.bf16.xpose.msra.mxu0 0
      %1066 = vmatprep.subr.bf16.mxu0 0
      %1067 = vmatpush1.bf16.xpose.msra.mxu0 0
      %1068 = vmatprep.subr.bf16.mxu0 0
      %1069 = vmatpush1.bf16.xpose.msra.mxu0 0
      %1070 = vmatprep.subr.bf16.mxu0 0
      %1071 = vmatpush1.bf16.xpose.msra.mxu0 0
      %1072 = vmatprep.subr.bf16.mxu0 0
      %1073 = vmatpush1.bf16.xpose.msra.mxu0 0
      %1074 = vmatprep.subr.bf16.mxu0 0
      %1075 = vmatpush1.bf16.xpose.msra.mxu0 0
      %1076 = vmatprep.subr.bf16.mxu0 0
      %1077 = vmatpush1.bf16.xpose.msra.mxu0 0
      %1078 = vmatprep.subr.bf16.mxu0 0
      %1079 = vmatpush1.bf16.xpose.msra.mxu0 0
      %1080 = vmatprep.subr.bf16.mxu0 0
      %1081 = vmatpush1.bf16.xpose.msra.mxu0 0
      %1082 = vmatprep.subr.bf16.mxu0 0
      %1083 = vmatpush1.bf16.xpose.msra.mxu0 0
      %1084 = vmatprep.mubr.bf16.mxu0 0
      %1085 = vmatmul.mubr.bf16.gmra.mrb[0].mxu0 %v1047
      %v1086 = vpop.f32.mrb[0].mxu0
      %v1087 = vadd.f32 0.0, %v1086
      %v1088 = vpop.f32.mrb[0].mxu0
      %v1089 = vpop.f32.mrb[0].mxu0
      %v1090 = vpop.f32.mrb[0].mxu0
      %1091 = vdwg.mxu0
      %v1092 = vmul.f32 %v1087, 0.35355338
      %v1093 = vadd.f32 %v1092, %v977
      %v1094 = vsel %vm925, %v1093, -inf
      %1095 = vmax.xlane.f32.xlu0 %v1094
      %v1096 = vpop.xlane.xlu0 %1095
      %v1097 = vsub.f32 %v1093, %v1096
      %v1098 = vmul.f32 %v1097, 1.442695
      %v1099 = vpow.pop %v1098
      %v1100 = vsel %vm925, %v1099, 0.0
      %1101 = vadd.xlane.f32.xlu0 %v1100
      %v1102 = vpop.xlane.xlu0 %1101
      %v1103 = vrcp.pop %v1102
      %v1104 = vmul.f32 %v1099, %v1103
      %v1105 = vpack.c.bf16 %v1104, %v1104
      %1106 = vrot.lane.b32.xlu0 %v920, 56
      %v1107 = vpop.permute.xlu0 %1106
      %v1109 = vsel %vm925, %v1105, 0
      %v1112 = vsel %vm997, %v1107, 0
      %1114 = vmatprep.subr.bf16.mxu0 0
      %1115 = vmatpush1.bf16.msra.mxu0 %v1112
      %1116 = vmatprep.subr.bf16.mxu0 0
      %1117 = vmatpush1.bf16.msra.mxu0 0
      %1118 = vmatprep.subr.bf16.mxu0 0
      %1119 = vmatpush1.bf16.msra.mxu0 0
      %1120 = vmatprep.subr.bf16.mxu0 0
      %1121 = vmatpush1.bf16.msra.mxu0 0
      %1122 = vmatprep.subr.bf16.mxu0 0
      %1123 = vmatpush1.bf16.msra.mxu0 0
      %1124 = vmatprep.subr.bf16.mxu0 0
      %1125 = vmatpush1.bf16.msra.mxu0 0
      %1126 = vmatprep.subr.bf16.mxu0 0
      %1127 = vmatpush1.bf16.msra.mxu0 0
      %1128 = vmatprep.subr.bf16.mxu0 0
      %1129 = vmatpush1.bf16.msra.mxu0 0
      %1130 = vmatprep.subr.bf16.mxu0 0
      %1131 = vmatpush1.bf16.msra.mxu0 0
      %1132 = vmatprep.subr.bf16.mxu0 0
      %1133 = vmatpush1.bf16.msra.mxu0 0
      %1134 = vmatprep.subr.bf16.mxu0 0
      %1135 = vmatpush1.bf16.msra.mxu0 0
      %1136 = vmatprep.subr.bf16.mxu0 0
      %1137 = vmatpush1.bf16.msra.mxu0 0
      %1138 = vmatprep.subr.bf16.mxu0 0
      %1139 = vmatpush1.bf16.msra.mxu0 0
      %1140 = vmatprep.subr.bf16.mxu0 0
      %1141 = vmatpush1.bf16.msra.mxu0 0
      %1142 = vmatprep.subr.bf16.mxu0 0
      %1143 = vmatpush1.bf16.msra.mxu0 0
      %1144 = vmatprep.subr.bf16.mxu0 0
      %1145 = vmatpush1.bf16.msra.mxu0 0
      %1146 = vmatprep.mubr.bf16.mxu0 0
      %1147 = vmatmul.mubr.bf16.gmra.mrb[0].mxu0 %v1109
      %v1148 = vpop.f32.mrb[0].mxu0
      %v1149 = vadd.f32 0.0, %v1148
      %v1150 = vpop.f32.mrb[0].mxu0
      %v1151 = vpop.f32.mrb[0].mxu0
      %v1152 = vpop.f32.mrb[0].mxu0
      %1153 = vdwg.mxu0
      %1155 = vrot.lane.b32.xlu0 %v1149, 8
      %v1156 = vpop.permute.xlu0 %1155
      %vm1158 = vcmask 130112
      %1159 = vst.msk [vmem:[#allocation3] sm:$0xff] %vm1158, %v1156
      %1160 = vrot.lane.b32.xlu0 %v920, 112
      %v1161 = vpop.permute.xlu0 %1160
      %1162 = vrot.lane.b32.xlu0 %v920, 80
      %v1163 = vpop.permute.xlu0 %1162
      %v1165 = vsel %vm925, %v1161, 0
      %v1168 = vsel %vm925, %v1163, 0
      %1170 = vmatprep.subr.bf16.mxu0 0
      %1171 = vmatpush1.bf16.xpose.msra.mxu0 %v1168
      %1172 = vmatprep.subr.bf16.mxu0 0
      %1173 = vmatpush1.bf16.xpose.msra.mxu0 0
      %1174 = vmatprep.subr.bf16.mxu0 0
      %1175 = vmatpush1.bf16.xpose.msra.mxu0 0
      %1176 = vmatprep.subr.bf16.mxu0 0
      %1177 = vmatpush1.bf16.xpose.msra.mxu0 0
      %1178 = vmatprep.subr.bf16.mxu0 0
      %1179 = vmatpush1.bf16.xpose.msra.mxu0 0
      %1180 = vmatprep.subr.bf16.mxu0 0
      %1181 = vmatpush1.bf16.xpose.msra.mxu0 0
      %1182 = vmatprep.subr.bf16.mxu0 0
      %1183 = vmatpush1.bf16.xpose.msra.mxu0 0
      %1184 = vmatprep.subr.bf16.mxu0 0
      %1185 = vmatpush1.bf16.xpose.msra.mxu0 0
      %1186 = vmatprep.subr.bf16.mxu0 0
      %1187 = vmatpush1.bf16.xpose.msra.mxu0 0
      %1188 = vmatprep.subr.bf16.mxu0 0
      %1189 = vmatpush1.bf16.xpose.msra.mxu0 0
      %1190 = vmatprep.subr.bf16.mxu0 0
      %1191 = vmatpush1.bf16.xpose.msra.mxu0 0
      %1192 = vmatprep.subr.bf16.mxu0 0
      %1193 = vmatpush1.bf16.xpose.msra.mxu0 0
      %1194 = vmatprep.subr.bf16.mxu0 0
      %1195 = vmatpush1.bf16.xpose.msra.mxu0 0
      %1196 = vmatprep.subr.bf16.mxu0 0
      %1197 = vmatpush1.bf16.xpose.msra.mxu0 0
      %1198 = vmatprep.subr.bf16.mxu0 0
      %1199 = vmatpush1.bf16.xpose.msra.mxu0 0
      %1200 = vmatprep.subr.bf16.mxu0 0
      %1201 = vmatpush1.bf16.xpose.msra.mxu0 0
      %1202 = vmatprep.mubr.bf16.mxu0 0
      %1203 = vmatmul.mubr.bf16.gmra.mrb[0].mxu0 %v1165
      %v1204 = vpop.f32.mrb[0].mxu0
      %v1205 = vadd.f32 0.0, %v1204
      %v1206 = vpop.f32.mrb[0].mxu0
      %v1207 = vpop.f32.mrb[0].mxu0
      %v1208 = vpop.f32.mrb[0].mxu0
      %1209 = vdwg.mxu0
      %v1210 = vmul.f32 %v1205, 0.35355338
      %v1211 = vadd.f32 %v1210, %v977
      %v1212 = vsel %vm925, %v1211, -inf
      %1213 = vmax.xlane.f32.xlu0 %v1212
      %v1214 = vpop.xlane.xlu0 %1213
      %v1215 = vsub.f32 %v1211, %v1214
      %v1216 = vmul.f32 %v1215, 1.442695
      %v1217 = vpow.pop %v1216
      %v1218 = vsel %vm925, %v1217, 0.0
      %1219 = vadd.xlane.f32.xlu0 %v1218
      %v1220 = vpop.xlane.xlu0 %1219
      %v1221 = vrcp.pop %v1220
      %v1222 = vmul.f32 %v1217, %v1221
      %v1223 = vpack.c.bf16 %v1222, %v1222
      %1224 = vrot.lane.b32.xlu0 %v920, 48
      %v1225 = vpop.permute.xlu0 %1224
      %v1227 = vsel %vm925, %v1223, 0
      %v1230 = vsel %vm997, %v1225, 0
      %1232 = vmatprep.subr.bf16.mxu0 0
      %1233 = vmatpush1.bf16.msra.mxu0 %v1230
      %1234 = vmatprep.subr.bf16.mxu0 0
      %1235 = vmatpush1.bf16.msra.mxu0 0
      %1236 = vmatprep.subr.bf16.mxu0 0
      %1237 = vmatpush1.bf16.msra.mxu0 0
      %1238 = vmatprep.subr.bf16.mxu0 0
      %1239 = vmatpush1.bf16.msra.mxu0 0
      %1240 = vmatprep.subr.bf16.mxu0 0
      %1241 = vmatpush1.bf16.msra.mxu0 0
      %1242 = vmatprep.subr.bf16.mxu0 0
      %1243 = vmatpush1.bf16.msra.mxu0 0
      %1244 = vmatprep.subr.bf16.mxu0 0
      %1245 = vmatpush1.bf16.msra.mxu0 0
      %1246 = vmatprep.subr.bf16.mxu0 0
      %1247 = vmatpush1.bf16.msra.mxu0 0
      %1248 = vmatprep.subr.bf16.mxu0 0
      %1249 = vmatpush1.bf16.msra.mxu0 0
      %1250 = vmatprep.subr.bf16.mxu0 0
      %1251 = vmatpush1.bf16.msra.mxu0 0
      %1252 = vmatprep.subr.bf16.mxu0 0
      %1253 = vmatpush1.bf16.msra.mxu0 0
      %1254 = vmatprep.subr.bf16.mxu0 0
      %1255 = vmatpush1.bf16.msra.mxu0 0
      %1256 = vmatprep.subr.bf16.mxu0 0
      %1257 = vmatpush1.bf16.msra.mxu0 0
      %1258 = vmatprep.subr.bf16.mxu0 0
      %1259 = vmatpush1.bf16.msra.mxu0 0
      %1260 = vmatprep.subr.bf16.mxu0 0
      %1261 = vmatpush1.bf16.msra.mxu0 0
      %1262 = vmatprep.subr.bf16.mxu0 0
      %1263 = vmatpush1.bf16.msra.mxu0 0
      %1264 = vmatprep.mubr.bf16.mxu0 0
      %1265 = vmatmul.mubr.bf16.gmra.mrb[0].mxu0 %v1227
      %v1266 = vpop.f32.mrb[0].mxu0
      %v1267 = vadd.f32 0.0, %v1266
      %v1268 = vpop.f32.mrb[0].mxu0
      %v1269 = vpop.f32.mrb[0].mxu0
      %v1270 = vpop.f32.mrb[0].mxu0
      %1271 = vdwg.mxu0
      %1273 = vrot.lane.b32.xlu0 %v1267, 16
      %v1274 = vpop.permute.xlu0 %1273
      %vm1276 = vcmask 195712
      %1277 = vst.msk [vmem:[#allocation3] sm:$0xff] %vm1276, %v1274
      %1278 = vrot.lane.b32.xlu0 %v920, 104
      %v1279 = vpop.permute.xlu0 %1278
      %1280 = vrot.lane.b32.xlu0 %v920, 72
      %v1281 = vpop.permute.xlu0 %1280
      %v1283 = vsel %vm925, %v1279, 0
      %v1286 = vsel %vm925, %v1281, 0
      %1288 = vmatprep.subr.bf16.mxu0 0
      %1289 = vmatpush1.bf16.xpose.msra.mxu0 %v1286
      %1290 = vmatprep.subr.bf16.mxu0 0
      %1291 = vmatpush1.bf16.xpose.msra.mxu0 0
      %1292 = vmatprep.subr.bf16.mxu0 0
      %1293 = vmatpush1.bf16.xpose.msra.mxu0 0
      %1294 = vmatprep.subr.bf16.mxu0 0
      %1295 = vmatpush1.bf16.xpose.msra.mxu0 0
      %1296 = vmatprep.subr.bf16.mxu0 0
      %1297 = vmatpush1.bf16.xpose.msra.mxu0 0
      %1298 = vmatprep.subr.bf16.mxu0 0
      %1299 = vmatpush1.bf16.xpose.msra.mxu0 0
      %1300 = vmatprep.subr.bf16.mxu0 0
      %1301 = vmatpush1.bf16.xpose.msra.mxu0 0
      %1302 = vmatprep.subr.bf16.mxu0 0
      %1303 = vmatpush1.bf16.xpose.msra.mxu0 0
      %1304 = vmatprep.subr.bf16.mxu0 0
      %1305 = vmatpush1.bf16.xpose.msra.mxu0 0
      %1306 = vmatprep.subr.bf16.mxu0 0
      %1307 = vmatpush1.bf16.xpose.msra.mxu0 0
      %1308 = vmatprep.subr.bf16.mxu0 0
      %1309 = vmatpush1.bf16.xpose.msra.mxu0 0
      %1310 = vmatprep.subr.bf16.mxu0 0
      %1311 = vmatpush1.bf16.xpose.msra.mxu0 0
      %1312 = vmatprep.subr.bf16.mxu0 0
      %1313 = vmatpush1.bf16.xpose.msra.mxu0 0
      %1314 = vmatprep.subr.bf16.mxu0 0
      %1315 = vmatpush1.bf16.xpose.msra.mxu0 0
      %1316 = vmatprep.subr.bf16.mxu0 0
      %1317 = vmatpush1.bf16.xpose.msra.mxu0 0
      %1318 = vmatprep.subr.bf16.mxu0 0
      %1319 = vmatpush1.bf16.xpose.msra.mxu0 0
      %1320 = vmatprep.mubr.bf16.mxu0 0
      %1321 = vmatmul.mubr.bf16.gmra.mrb[0].mxu0 %v1283
      %v1322 = vpop.f32.mrb[0].mxu0
      %v1323 = vadd.f32 0.0, %v1322
      %v1324 = vpop.f32.mrb[0].mxu0
      %v1325 = vpop.f32.mrb[0].mxu0
      %v1326 = vpop.f32.mrb[0].mxu0
      %1327 = vdwg.mxu0
      %v1328 = vmul.f32 %v1323, 0.35355338
      %v1329 = vadd.f32 %v1328, %v977
      %v1330 = vsel %vm925, %v1329, -inf
      %1331 = vmax.xlane.f32.xlu0 %v1330
      %v1332 = vpop.xlane.xlu0 %1331
      %v1333 = vsub.f32 %v1329, %v1332
      %v1334 = vmul.f32 %v1333, 1.442695
      %v1335 = vpow.pop %v1334
      %v1336 = vsel %vm925, %v1335, 0.0
      %1337 = vadd.xlane.f32.xlu0 %v1336
      %v1338 = vpop.xlane.xlu0 %1337
      %v1339 = vrcp.pop %v1338
      %v1340 = vmul.f32 %v1335, %v1339
      %v1341 = vpack.c.bf16 %v1340, %v1340
      %1342 = vrot.lane.b32.xlu0 %v920, 40
      %v1343 = vpop.permute.xlu0 %1342
      %v1345 = vsel %vm925, %v1341, 0
      %v1348 = vsel %vm997, %v1343, 0
      %1350 = vmatprep.subr.bf16.mxu0 0
      %1351 = vmatpush1.bf16.msra.mxu0 %v1348
      %1352 = vmatprep.subr.bf16.mxu0 0
      %1353 = vmatpush1.bf16.msra.mxu0 0
      %1354 = vmatprep.subr.bf16.mxu0 0
      %1355 = vmatpush1.bf16.msra.mxu0 0
      %1356 = vmatprep.subr.bf16.mxu0 0
      %1357 = vmatpush1.bf16.msra.mxu0 0
      %1358 = vmatprep.subr.bf16.mxu0 0
      %1359 = vmatpush1.bf16.msra.mxu0 0
      %1360 = vmatprep.subr.bf16.mxu0 0
      %1361 = vmatpush1.bf16.msra.mxu0 0
      %1362 = vmatprep.subr.bf16.mxu0 0
      %1363 = vmatpush1.bf16.msra.mxu0 0
      %1364 = vmatprep.subr.bf16.mxu0 0
      %1365 = vmatpush1.bf16.msra.mxu0 0
      %1366 = vmatprep.subr.bf16.mxu0 0
      %1367 = vmatpush1.bf16.msra.mxu0 0
      %1368 = vmatprep.subr.bf16.mxu0 0
      %1369 = vmatpush1.bf16.msra.mxu0 0
      %1370 = vmatprep.subr.bf16.mxu0 0
      %1371 = vmatpush1.bf16.msra.mxu0 0
      %1372 = vmatprep.subr.bf16.mxu0 0
      %1373 = vmatpush1.bf16.msra.mxu0 0
      %1374 = vmatprep.subr.bf16.mxu0 0
      %1375 = vmatpush1.bf16.msra.mxu0 0
      %1376 = vmatprep.subr.bf16.mxu0 0
      %1377 = vmatpush1.bf16.msra.mxu0 0
      %1378 = vmatprep.subr.bf16.mxu0 0
      %1379 = vmatpush1.bf16.msra.mxu0 0
      %1380 = vmatprep.subr.bf16.mxu0 0
      %1381 = vmatpush1.bf16.msra.mxu0 0
      %1382 = vmatprep.mubr.bf16.mxu0 0
      %1383 = vmatmul.mubr.bf16.gmra.mrb[0].mxu0 %v1345
      %v1384 = vpop.f32.mrb[0].mxu0
      %v1385 = vadd.f32 0.0, %v1384
      %v1386 = vpop.f32.mrb[0].mxu0
      %v1387 = vpop.f32.mrb[0].mxu0
      %v1388 = vpop.f32.mrb[0].mxu0
      %1389 = vdwg.mxu0
      %1391 = vrot.lane.b32.xlu0 %v1385, 24
      %v1392 = vpop.permute.xlu0 %1391
      %vm1394 = vcmask 261312
      %1395 = vst.msk [vmem:[#allocation3] sm:$0xff] %vm1394, %v1392
      %v1396 = vld [vmem:[#allocation3] sm:$0xff]
      %v1397 = vpack.c.bf16 %v1396, %v1396
      %v1398 = vld [vmem:[%s807] sm:$0xf]
      %v1399 = vld [vmem:[%s807 + $0x4] sm:$0xf]
      %v1400 = vld [vmem:[%s807 + $0x8] sm:$0xf]
      %v1401 = vld [vmem:[%s807 + $0xc] sm:$0xf]
      %v1402 = vld [vmem:[%s810] sm:$0x1]
      %v1404 = vlaneseq
      %v1405 = vshrl.u32 %v1404, 7
      %v1406 = vsub.s32 0, %v1405
      %v1407 = vrot.slane %v1402, %v1406
      %v1413 = vunpack.c.l.b16 %v1398
      %v1414 = vunpack.c.l.b16 %v1399
      %v1415 = vunpack.c.l.b16 %v1400
      %v1416 = vunpack.c.l.b16 %v1401
      %v1417 = vpack.c.b16 %v1414, %v1413
      %v1418 = vpack.c.b16 %v1416, %v1415
      %v1422 = vsel %vm876, %v1397, 0
      %1424 = vmatprep.subr.bf16.mxu0 0
      %1425 = vmatpush1.bf16.msra.mxu0 %v1417
      %1426 = vmatprep.subr.bf16.mxu0 0
      %1427 = vmatpush1.bf16.msra.mxu0 %v1418
      %1428 = vmatprep.subr.bf16.mxu0 0
      %1429 = vmatpush1.bf16.msra.mxu0 0
      %1430 = vmatprep.subr.bf16.mxu0 0
      %1431 = vmatpush1.bf16.msra.mxu0 0
      %1432 = vmatprep.subr.bf16.mxu0 0
      %1433 = vmatpush1.bf16.msra.mxu0 0
      %1434 = vmatprep.subr.bf16.mxu0 0
      %1435 = vmatpush1.bf16.msra.mxu0 0
      %1436 = vmatprep.subr.bf16.mxu0 0
      %1437 = vmatpush1.bf16.msra.mxu0 0
      %1438 = vmatprep.subr.bf16.mxu0 0
      %1439 = vmatpush1.bf16.msra.mxu0 0
      %1440 = vmatprep.subr.bf16.mxu0 0
      %1441 = vmatpush1.bf16.msra.mxu0 0
      %1442 = vmatprep.subr.bf16.mxu0 0
      %1443 = vmatpush1.bf16.msra.mxu0 0
      %1444 = vmatprep.subr.bf16.mxu0 0
      %1445 = vmatpush1.bf16.msra.mxu0 0
      %1446 = vmatprep.subr.bf16.mxu0 0
      %1447 = vmatpush1.bf16.msra.mxu0 0
      %1448 = vmatprep.subr.bf16.mxu0 0
      %1449 = vmatpush1.bf16.msra.mxu0 0
      %1450 = vmatprep.subr.bf16.mxu0 0
      %1451 = vmatpush1.bf16.msra.mxu0 0
      %1452 = vmatprep.subr.bf16.mxu0 0
      %1453 = vmatpush1.bf16.msra.mxu0 0
      %1454 = vmatprep.subr.bf16.mxu0 0
      %1455 = vmatpush1.bf16.msra.mxu0 0
      %1456 = vmatprep.mubr.bf16.mxu0 0
      %1457 = vmatmul.mubr.bf16.gmra.mrb[0].mxu0 %v1422
      %v1458 = vpop.f32.mrb[0].mxu0
      %v1459 = vadd.f32 %v1407, %v1458
      %v1460 = vpop.f32.mrb[0].mxu0
      %v1461 = vpop.f32.mrb[0].mxu0
      %v1462 = vpop.f32.mrb[0].mxu0
      %1463 = vdwg.mxu0
      %v1464 = vadd.f32 %v851, %v1459
      %v1465 = vld [vmem:[%s813] sm:$0x1]
      %v1466 = vld [vmem:[%s816] sm:$0x1]
      %v1467 = vsel %vm876, %v1464, 0.0
      %1468 = vadd.xlane.f32.xlu0 %v1467
      %v1469 = vpop.xlane.xlu0 %1468
      %v1470 = vrcp.pop 32.0
      %v1471 = vmul.f32 %v1469, %v1470
      %v1472 = vsub.f32 %v1464, %v1471
      %v1473 = vmul.f32 %v1472, %v1472
      %v1474 = vsel %vm876, %v1473, 0.0
      %1475 = vadd.xlane.f32.xlu0 %v1474
      %v1476 = vpop.xlane.xlu0 %1475
      %v1477 = vmul.f32 %v1476, %v1470
      %v1478 = vadd.f32 %v1477, 1e-12
      %v1479 = vrsqrt.pop %v1478
      %v1480 = vmul.f32 %v1472, %v1479
      %v1482 = vlaneseq
      %v1483 = vshrl.u32 %v1482, 7
      %v1484 = vsub.s32 0, %v1483
      %v1485 = vrot.slane %v1465, %v1484
      %v1487 = vmul.f32 %v1480, %v1485
      %v1489 = vlaneseq
      %v1490 = vshrl.u32 %v1489, 7
      %v1491 = vsub.s32 0, %v1490
      %v1492 = vrot.slane %v1466, %v1491
      %v1494 = vadd.f32 %v1487, %v1492
      %v1495 = vpack.c.bf16 %v1494, %v1494
      %v1496 = vld [vmem:[%s821] sm:$0xf]
      %v1497 = vld [vmem:[%s821 + $0x4] sm:$0xf]
      %v1498 = vld [vmem:[%s821 + $0x8] sm:$0xf]
      %v1499 = vld [vmem:[%s821 + $0xc] sm:$0xf]
      %v1500 = vld [vmem:[%s824] sm:$0x1]
      %v1502 = vlaneseq
      %v1503 = vshrl.u32 %v1502, 7
      %v1504 = vsub.s32 0, %v1503
      %v1505 = vrot.slane %v1500, %v1504
      %v1511 = vunpack.c.l.b16 %v1496
      %v1512 = vunpack.c.l.b16 %v1497
      %v1513 = vunpack.c.l.b16 %v1498
      %v1514 = vunpack.c.l.b16 %v1499
      %v1515 = vpack.c.b16 %v1512, %v1511
      %v1516 = vpack.c.b16 %v1514, %v1513
      %v1520 = vsel %vm876, %v1495, 0
      %1522 = vmatprep.subr.bf16.mxu0 0
      %1523 = vmatpush1.bf16.msra.mxu0 %v1515
      %1524 = vmatprep.subr.bf16.mxu0 0
      %1525 = vmatpush1.bf16.msra.mxu0 %v1516
      %1526 = vmatprep.subr.bf16.mxu0 0
      %1527 = vmatpush1.bf16.msra.mxu0 0
      %1528 = vmatprep.subr.bf16.mxu0 0
      %1529 = vmatpush1.bf16.msra.mxu0 0
      %1530 = vmatprep.subr.bf16.mxu0 0
      %1531 = vmatpush1.bf16.msra.mxu0 0
      %1532 = vmatprep.subr.bf16.mxu0 0
      %1533 = vmatpush1.bf16.msra.mxu0 0
      %1534 = vmatprep.subr.bf16.mxu0 0
      %1535 = vmatpush1.bf16.msra.mxu0 0
      %1536 = vmatprep.subr.bf16.mxu0 0
      %1537 = vmatpush1.bf16.msra.mxu0 0
      %1538 = vmatprep.subr.bf16.mxu0 0
      %1539 = vmatpush1.bf16.msra.mxu0 0
      %1540 = vmatprep.subr.bf16.mxu0 0
      %1541 = vmatpush1.bf16.msra.mxu0 0
      %1542 = vmatprep.subr.bf16.mxu0 0
      %1543 = vmatpush1.bf16.msra.mxu0 0
      %1544 = vmatprep.subr.bf16.mxu0 0
      %1545 = vmatpush1.bf16.msra.mxu0 0
      %1546 = vmatprep.subr.bf16.mxu0 0
      %1547 = vmatpush1.bf16.msra.mxu0 0
      %1548 = vmatprep.subr.bf16.mxu0 0
      %1549 = vmatpush1.bf16.msra.mxu0 0
      %1550 = vmatprep.subr.bf16.mxu0 0
      %1551 = vmatpush1.bf16.msra.mxu0 0
      %1552 = vmatprep.subr.bf16.mxu0 0
      %1553 = vmatpush1.bf16.msra.mxu0 0
      %1554 = vmatprep.mubr.bf16.mxu0 0
      %1555 = vmatmul.mubr.bf16.gmra.mrb[0].mxu0 %v1520
      %v1556 = vpop.f32.mrb[0].mxu0
      %v1557 = vadd.f32 %v1505, %v1556
      %v1558 = vpop.f32.mrb[0].mxu0
      %v1559 = vpop.f32.mrb[0].mxu0
      %v1560 = vpop.f32.mrb[0].mxu0
      %1561 = vdwg.mxu0
      %v1562 = vmul.f32 %v1557, 0.5
      %v1563 = vmul.f32 %v1557, 0.70710677
      %v1564 = verf.f32.pop %v1563
      %v1565 = vadd.f32 %v1564, 1.0
      %v1566 = vmul.f32 %v1562, %v1565
      %v1567 = vpack.c.bf16 %v1566, %v1566
      %v1568 = vld [vmem:[%s829] sm:$0xf]
      %v1569 = vld [vmem:[%s829 + $0x4] sm:$0xf]
      %v1570 = vld [vmem:[%s829 + $0x8] sm:$0xf]
      %v1571 = vld [vmem:[%s829 + $0xc] sm:$0xf]
      %v1572 = vld [vmem:[%s829 + $0x10] sm:$0xf]
      %v1573 = vld [vmem:[%s829 + $0x14] sm:$0xf]
      %v1574 = vld [vmem:[%s829 + $0x18] sm:$0xf]
      %v1575 = vld [vmem:[%s829 + $0x1c] sm:$0xf]
      %v1576 = vld [vmem:[%s832] sm:$0x1]
      %v1578 = vlaneseq
      %v1579 = vshrl.u32 %v1578, 7
      %v1580 = vsub.s32 0, %v1579
      %v1581 = vrot.slane %v1576, %v1580
      %v1591 = vunpack.c.l.b16 %v1568
      %v1592 = vunpack.c.l.b16 %v1569
      %v1593 = vunpack.c.l.b16 %v1570
      %v1594 = vunpack.c.l.b16 %v1571
      %v1595 = vunpack.c.l.b16 %v1572
      %v1596 = vunpack.c.l.b16 %v1573
      %v1597 = vunpack.c.l.b16 %v1574
      %v1598 = vunpack.c.l.b16 %v1575
      %v1599 = vpack.c.b16 %v1592, %v1591
      %v1600 = vpack.c.b16 %v1594, %v1593
      %v1601 = vpack.c.b16 %v1596, %v1595
      %v1602 = vpack.c.b16 %v1598, %v1597
      %vm1607 = vcmask 523264
      %v1609 = vsel %vm1607, %v1567, 0
      %1611 = vmatprep.subr.bf16.mxu0 0
      %1612 = vmatpush1.bf16.msra.mxu0 %v1599
      %1613 = vmatprep.subr.bf16.mxu0 0
      %1614 = vmatpush1.bf16.msra.mxu0 %v1600
      %1615 = vmatprep.subr.bf16.mxu0 0
      %1616 = vmatpush1.bf16.msra.mxu0 %v1601
      %1617 = vmatprep.subr.bf16.mxu0 0
      %1618 = vmatpush1.bf16.msra.mxu0 %v1602
      %1619 = vmatprep.subr.bf16.mxu0 0
      %1620 = vmatpush1.bf16.msra.mxu0 0
      %1621 = vmatprep.subr.bf16.mxu0 0
      %1622 = vmatpush1.bf16.msra.mxu0 0
      %1623 = vmatprep.subr.bf16.mxu0 0
      %1624 = vmatpush1.bf16.msra.mxu0 0
      %1625 = vmatprep.subr.bf16.mxu0 0
      %1626 = vmatpush1.bf16.msra.mxu0 0
      %1627 = vmatprep.subr.bf16.mxu0 0
      %1628 = vmatpush1.bf16.msra.mxu0 0
      %1629 = vmatprep.subr.bf16.mxu0 0
      %1630 = vmatpush1.bf16.msra.mxu0 0
      %1631 = vmatprep.subr.bf16.mxu0 0
      %1632 = vmatpush1.bf16.msra.mxu0 0
      %1633 = vmatprep.subr.bf16.mxu0 0
      %1634 = vmatpush1.bf16.msra.mxu0 0
      %1635 = vmatprep.subr.bf16.mxu0 0
      %1636 = vmatpush1.bf16.msra.mxu0 0
      %1637 = vmatprep.subr.bf16.mxu0 0
      %1638 = vmatpush1.bf16.msra.mxu0 0
      %1639 = vmatprep.subr.bf16.mxu0 0
      %1640 = vmatpush1.bf16.msra.mxu0 0
      %1641 = vmatprep.subr.bf16.mxu0 0
      %1642 = vmatpush1.bf16.msra.mxu0 0
      %1643 = vmatprep.mubr.bf16.mxu0 0
      %1644 = vmatmul.mubr.bf16.gmra.mrb[0].mxu0 %v1609
      %v1645 = vpop.f32.mrb[0].mxu0
      %v1646 = vadd.f32 %v1581, %v1645
      %v1647 = vpop.f32.mrb[0].mxu0
      %v1648 = vpop.f32.mrb[0].mxu0
      %v1649 = vpop.f32.mrb[0].mxu0
      %1650 = vdwg.mxu0
      %v1651 = vadd.f32 %v1494, %v1646
      %v1652 = vld [vmem:[%s835] sm:$0x1]
      %v1653 = vld [vmem:[%s838] sm:$0x1]
      %v1654 = vsel %vm876, %v1651, 0.0
      %1655 = vadd.xlane.f32.xlu0 %v1654
      %v1656 = vpop.xlane.xlu0 %1655
      %v1657 = vmul.f32 %v1656, %v1470
      %v1658 = vsub.f32 %v1651, %v1657
      %v1659 = vmul.f32 %v1658, %v1658
      %v1660 = vsel %vm876, %v1659, 0.0
      %1661 = vadd.xlane.f32.xlu0 %v1660
      %v1662 = vpop.xlane.xlu0 %1661
      %v1663 = vmul.f32 %v1662, %v1470
      %v1664 = vadd.f32 %v1663, 1e-12
      %v1665 = vrsqrt.pop %v1664
      %v1666 = vmul.f32 %v1658, %v1665
      %v1668 = vlaneseq
      %v1669 = vshrl.u32 %v1668, 7
      %v1670 = vsub.s32 0, %v1669
      %v1671 = vrot.slane %v1652, %v1670
      %v1673 = vmul.f32 %v1666, %v1671
      %v1675 = vlaneseq
      %v1676 = vshrl.u32 %v1675, 7
      %v1677 = vsub.s32 0, %v1676
      %v1678 = vrot.slane %v1653, %v1677
      %v1680 = vadd.f32 %v1673, %v1678
      %1681 = vst.msk [vmem:[#allocation2] sm:$0xff] %vm876, %v1680
      %p1682 = scmp.eq.s32.totalorder %s36, 1
      // Predicated region
      $region105: #{forward.1} parent=99 // pred_check
        %p1683 = pneg %p1682
      $region106: #{forward.1} parent=99 // pred_check_branch
        %1685 = sbr.rel (%p1683) target = $region108
      $region107: #{forward.1} parent=99 // pred_region
        %v1686 = vpack.c.bf16 %v1680, %v1680
        %v1687 = vld [vmem:[%s14] sm:$0xf]
        %v1688 = vld [vmem:[%s14 + $0x4] sm:$0xf]
        %v1689 = vld [vmem:[%s14 + $0x8] sm:$0xf]
        %v1690 = vld [vmem:[%s14 + $0xc] sm:$0xf]
        %v1691 = vld [vmem:[%s15] sm:$0x1]
        %v1696 = vunpack.c.l.b16 %v1687
        %v1697 = vunpack.c.l.b16 %v1688
        %v1698 = vunpack.c.l.b16 %v1689
        %v1699 = vunpack.c.l.b16 %v1690
        %v1700 = vpack.c.b16 %v1697, %v1696
        %v1701 = vpack.c.b16 %v1699, %v1698
        %v1705 = vsel %vm876, %v1686, 0
        %1707 = vmatprep.subr.bf16.mxu0 0
        %1708 = vmatpush1.bf16.msra.mxu0 %v1700
        %1709 = vmatprep.subr.bf16.mxu0 0
        %1710 = vmatpush1.bf16.msra.mxu0 %v1701
        %1711 = vmatprep.subr.bf16.mxu0 0
        %1712 = vmatpush1.bf16.msra.mxu0 0
        %1713 = vmatprep.subr.bf16.mxu0 0
        %1714 = vmatpush1.bf16.msra.mxu0 0
        %1715 = vmatprep.subr.bf16.mxu0 0
        %1716 = vmatpush1.bf16.msra.mxu0 0
        %1717 = vmatprep.subr.bf16.mxu0 0
        %1718 = vmatpush1.bf16.msra.mxu0 0
        %1719 = vmatprep.subr.bf16.mxu0 0
        %1720 = vmatpush1.bf16.msra.mxu0 0
        %1721 = vmatprep.subr.bf16.mxu0 0
        %1722 = vmatpush1.bf16.msra.mxu0 0
        %1723 = vmatprep.subr.bf16.mxu0 0
        %1724 = vmatpush1.bf16.msra.mxu0 0
        %1725 = vmatprep.subr.bf16.mxu0 0
        %1726 = vmatpush1.bf16.msra.mxu0 0
        %1727 = vmatprep.subr.bf16.mxu0 0
        %1728 = vmatpush1.bf16.msra.mxu0 0
        %1729 = vmatprep.subr.bf16.mxu0 0
        %1730 = vmatpush1.bf16.msra.mxu0 0
        %1731 = vmatprep.subr.bf16.mxu0 0
        %1732 = vmatpush1.bf16.msra.mxu0 0
        %1733 = vmatprep.subr.bf16.mxu0 0
        %1734 = vmatpush1.bf16.msra.mxu0 0
        %1735 = vmatprep.subr.bf16.mxu0 0
        %1736 = vmatpush1.bf16.msra.mxu0 0
        %1737 = vmatprep.subr.bf16.mxu0 0
        %1738 = vmatpush1.bf16.msra.mxu0 0
        %1739 = vmatprep.mubr.bf16.mxu0 0
        %1740 = vmatmul.mubr.bf16.gmra.mrb[0].mxu0 %v1705
        %v1741 = vpop.f32.mrb[0].mxu0
        %v1742 = vadd.f32 %v1691, %v1741
        %v1743 = vpop.f32.mrb[0].mxu0
        %v1744 = vpop.f32.mrb[0].mxu0
        %v1745 = vpop.f32.mrb[0].mxu0
        %1746 = vdwg.mxu0
        %v1747 = vtanh.pop %v1742
        %v1748 = vld [vmem:[%s16] sm:$0x1]
        %v1749 = vld [vmem:[%s17] sm:$0x1]
        %vm1750 = vcmask 253952
        %v1751 = vsel %vm1750, %v1747, 0.0
        %1752 = vadd.xlane.f32.xlu0 %v1751
        %v1753 = vpop.xlane.xlu0 %1752
        %v1754 = vmul.f32 %v1753, %v1470
        %v1755 = vsub.f32 %v1747, %v1754
        %v1756 = vmul.f32 %v1755, %v1755
        %v1757 = vsel %vm1750, %v1756, 0.0
        %1758 = vadd.xlane.f32.xlu0 %v1757
        %v1759 = vpop.xlane.xlu0 %1758
        %v1760 = vmul.f32 %v1759, %v1470
        %v1761 = vadd.f32 %v1760, 1e-05
        %v1762 = vrsqrt.pop %v1761
        %v1763 = vmul.f32 %v1755, %v1762
        %v1764 = vmul.f32 %v1763, %v1748
        %v1765 = vadd.f32 %v1764, %v1749
        %v1766 = vpack.c.bf16 %v1765, %v1765
        %v1767 = vld [vmem:[%s18] sm:$0xf]
        %v1768 = vld [vmem:[%s18 + $0x4] sm:$0xf]
        %v1769 = vld [vmem:[%s18 + $0x8] sm:$0xf]
        %v1770 = vld [vmem:[%s18 + $0xc] sm:$0xf]
        %v1771 = vld [vmem:[%s19] sm:$0x1]
        %v1776 = vunpack.c.l.b16 %v1767
        %v1777 = vunpack.c.l.b16 %v1768
        %v1778 = vunpack.c.l.b16 %v1769
        %v1779 = vunpack.c.l.b16 %v1770
        %v1780 = vpack.c.b16 %v1777, %v1776
        %v1781 = vpack.c.b16 %v1779, %v1778
        %v1785 = vsel %vm876, %v1766, 0
        %1787 = vmatprep.subr.bf16.mxu0 0
        %1788 = vmatpush1.bf16.msra.mxu0 %v1780
        %1789 = vmatprep.subr.bf16.mxu0 0
        %1790 = vmatpush1.bf16.msra.mxu0 %v1781
        %1791 = vmatprep.subr.bf16.mxu0 0
        %1792 = vmatpush1.bf16.msra.mxu0 0
        %1793 = vmatprep.subr.bf16.mxu0 0
        %1794 = vmatpush1.bf16.msra.mxu0 0
        %1795 = vmatprep.subr.bf16.mxu0 0
        %1796 = vmatpush1.bf16.msra.mxu0 0
        %1797 = vmatprep.subr.bf16.mxu0 0
        %1798 = vmatpush1.bf16.msra.mxu0 0
        %1799 = vmatprep.subr.bf16.mxu0 0
        %1800 = vmatpush1.bf16.msra.mxu0 0
        %1801 = vmatprep.subr.bf16.mxu0 0
        %1802 = vmatpush1.bf16.msra.mxu0 0
        %1803 = vmatprep.subr.bf16.mxu0 0
        %1804 = vmatpush1.bf16.msra.mxu0 0
        %1805 = vmatprep.subr.bf16.mxu0 0
        %1806 = vmatpush1.bf16.msra.mxu0 0
        %1807 = vmatprep.subr.bf16.mxu0 0
        %1808 = vmatpush1.bf16.msra.mxu0 0
        %1809 = vmatprep.subr.bf16.mxu0 0
        %1810 = vmatpush1.bf16.msra.mxu0 0
        %1811 = vmatprep.subr.bf16.mxu0 0
        %1812 = vmatpush1.bf16.msra.mxu0 0
        %1813 = vmatprep.subr.bf16.mxu0 0
        %1814 = vmatpush1.bf16.msra.mxu0 0
        %1815 = vmatprep.subr.bf16.mxu0 0
        %1816 = vmatpush1.bf16.msra.mxu0 0
        %1817 = vmatprep.subr.bf16.mxu0 0
        %1818 = vmatpush1.bf16.msra.mxu0 0
        %1819 = vmatprep.mubr.bf16.mxu0 0
        %1820 = vmatmul.mubr.bf16.gmra.mrb[0].mxu0 %v1785
        %v1821 = vpop.f32.mrb[0].mxu0
        %v1822 = vadd.f32 %v1771, %v1821
        %v1823 = vpop.f32.mrb[0].mxu0
        %v1824 = vpop.f32.mrb[0].mxu0
        %v1825 = vpop.f32.mrb[0].mxu0
        %1826 = vdwg.mxu0
        %v1827 = vlaneseq
        %v1828 = vshrl.u32 %v1827, 7
        %v1829 = vsub.s32 0, %v1828
        %v1830 = vrot.slane %v1822, %v1829
        %1831 = vst [vmem:[%s842] sm:$0xff] %v1830
      $region108: #{forward.1} parent=99 // pred_fallthru
        _
      %p1832 = scmp.lt.s32.totalorder %s35, 1
      %s1833 = scalar_select %p1832, %s35, 1
      %s1834 = smul.addr %s1833, 8
      %s1835 = scalar_lea.vmem %s20, %s1834
      // Predicated region
      $region109: #{forward.1} parent=99 // pred_check
        %p1836 = pneg %p551
      $region110: #{forward.1} parent=99 // pred_check_branch
        %1838 = sbr.rel (%p1836) target = $region112
      $region111: #{forward.1} parent=99 // pred_region
        _
      $region112: #{forward.1} parent=99 // pred_fallthru
        _
    $region100: #{forward.1} parent=5 // pred_fallthru
      _
    %p1839 = scmp.le.s32.totalorder 2, %s26
    // Predicated region
    $region113: #{forward.1} parent=5 // pred_check
      %p1840 = pneg %p1839
    $region114: #{forward.1} parent=5 // pred_check_branch
      %1842 = sbr.rel (%p1840) target = $region116
    $region115: #{forward.1} parent=5 // pred_region
      %s1843 = ssub.s32 %s26, 2
      // Predicated region
      $region117: #{forward.1} parent=115 // pred_check
        %p1844 = pneg %p557
      $region118: #{forward.1} parent=115 // pred_check_branch
        %1846 = sbr.rel (%p1844) target = $region120
      $region119: #{forward.1} parent=115 // pred_region
        %p1847 = scmp.lt.s32.totalorder %s37, 1
        %s1848 = scalar_select %p1847, %s37, 1
        %s1849 = smul.addr %s1848, 8
        %s1850 = scalar_lea.vmem %s20, %s1849
      $region120: #{forward.1} parent=115 // pred_fallthru
        _
    $region116: #{forward.1} parent=5 // pred_fallthru
      _
  $region6: #{forward.1} parent=0 // loop_footer
    %s30 = sadd.s32 1, %s26
  $region7: #{forward.1} parent=0 // loop_footer_branch
    %25 = sbr.rel target = $region3
  $region8: #{forward.1} parent=0 // loop_exit
    _

</llo_original>
